<compile_context>
chip_gen: v7x
topology: tpu7x:2x2x1
jax: 0.10.0
libtpu: 0.0.40
codegen_flags: <defaults>
</compile_context>

<pallas_src>
import functools
import math

import jax
import jax.numpy as jnp
from jax.experimental import pallas as pl
from jax.experimental.pallas import tpu as pltpu


NEG_INF = -1e30  # finite "minus infinity": avoids inf - inf NaN paths
VMEM_LIMIT = 48 * 1024 * 1024  # safe on v5e/v6e (128 MiB) and v7x (64 MiB) physical


def _pick_tile(dim, cap):
    """Full dim if it fits, otherwise `cap` (must divide dim)."""
    if dim <= cap:
        return dim
    assert dim % cap == 0, f"dim {dim} not divisible by tile {cap}"
    return cap


# ---------------------------------------------------------------------------
# Tiled linear kernels:  y = x @ w.T   (w kept in PyTorch (out, in) layout)
# Operands cast to bf16 in VMEM (MXU), accumulation in f32.
# ---------------------------------------------------------------------------

def _dot_bf16(x, w):
    # Contract x's K dim with w's second dim (w is (N, K)): x @ w.T on the MXU.
    return jax.lax.dot_general(
        x.astype(jnp.bfloat16), w.astype(jnp.bfloat16),
        dimension_numbers=(((1,), (1,)), ((), ())),
        preferred_element_type=jnp.float32)


def _linear_inplace_kernel(x_ref, w_ref, o_ref):
    # f32 output: accumulate directly into the resident output block (no scratch).
    @pl.when(pl.program_id(2) == 0)
    def _init():
        o_ref[...] = jnp.zeros_like(o_ref)

    o_ref[...] += _dot_bf16(x_ref[...], w_ref[...])


def _linear_acc_kernel(x_ref, w_ref, o_ref, acc_ref):
    # non-f32 output: f32 VMEM accumulator, cast once at the last K step.
    @pl.when(pl.program_id(2) == 0)
    def _init():
        acc_ref[...] = jnp.zeros_like(acc_ref)

    acc_ref[...] += _dot_bf16(x_ref[...], w_ref[...])

    @pl.when(pl.program_id(2) == pl.num_programs(2) - 1)
    def _done():
        o_ref[...] = acc_ref[...].astype(o_ref.dtype)


def pallas_linear(x2d, w, out_dtype=jnp.float32, *, tm_cap=256, tn_cap=512, tk_cap=1024):
    """x2d: (M, K); w: (N, K) PyTorch nn.Linear weight.  Returns (M, N) = x @ w.T."""
    M, K = x2d.shape
    N, K2 = w.shape
    assert K == K2
    tm = _pick_tile(M, tm_cap)
    tn = _pick_tile(N, tn_cap)
    tk = _pick_tile(K, tk_cap)

    inplace = jnp.dtype(out_dtype) == jnp.dtype(jnp.float32)
    kernel = _linear_inplace_kernel if inplace else _linear_acc_kernel
    scratch = [] if inplace else [pltpu.VMEM((tm, tn), jnp.float32)]

    return pl.pallas_call(
        kernel,
        out_shape=jax.ShapeDtypeStruct((M, N), out_dtype),
        grid=(M // tm, N // tn, K // tk),
        in_specs=[
            pl.BlockSpec((tm, tk), lambda i, j, k: (i, k)),
            pl.BlockSpec((tn, tk), lambda i, j, k: (j, k)),
        ],
        out_specs=pl.BlockSpec((tm, tn), lambda i, j, k: (i, j)),
        scratch_shapes=scratch,
        compiler_params=pltpu.CompilerParams(
            dimension_semantics=("parallel", "parallel", "arbitrary"),
            vmem_limit_bytes=VMEM_LIMIT),
    )(x2d, w)


# ---------------------------------------------------------------------------
# Flash-style rotary + causal attention kernel (one head per grid step)
# ---------------------------------------------------------------------------

def _rotary(x, cos, sin_signed, use_roll):
    """x/cos/sin_signed: (T, Dh) f32.  sin_signed already carries the rotate-half sign
    (and, for q, the 1/sqrt(Dh) scale), so only a half-swap of x is needed."""
    half = x.shape[-1] // 2
    if use_roll:
        rh = pltpu.roll(x, half, 1)                      # XLU lane rotation (free-ish)
    else:
        rh = jnp.concatenate([x[:, half:], x[:, :half]], axis=-1)
    return x * cos + rh * sin_signed


def _flash_attn_kernel(qi_ref, ki_ref,                       # scalar-prefetch (SMEM)
                       q_ref, k_ref, v_ref,                  # (tq, Dh)/(tk, Dh) bf16
                       cq_ref, sq_ref, ck_ref, sk_ref,       # (tile, Dh) bf16 tables
                       o_ref,                                # (tq, Dh) bf16
                       qrot_scr, m_scr, l_scr, acc_scr,      # VMEM scratch
                       *, use_roll):
    t = pl.program_id(2)
    qi = qi_ref[t]
    ki = ki_ref[t]
    tq, _ = q_ref.shape
    tk = k_ref.shape[0]

    # --- init (first kv step of each (b, h, q-block) group): rotate+scale q once ---
    @pl.when(ki == 0)
    def _init():
        qr = _rotary(q_ref[...].astype(jnp.float32),
                     cq_ref[...].astype(jnp.float32),
                     sq_ref[...].astype(jnp.float32), use_roll)
        qrot_scr[...] = qr.astype(jnp.bfloat16)
        m_scr[...] = jnp.full_like(m_scr, NEG_INF)
        l_scr[...] = jnp.zeros_like(l_scr)
        acc_scr[...] = jnp.zeros_like(acc_scr)

    def _step(is_diag):
        kr = _rotary(k_ref[...].astype(jnp.float32),
                     ck_ref[...].astype(jnp.float32),
                     sk_ref[...].astype(jnp.float32), use_roll)
        # q @ k.T: bf16 operands, f32 accumulation (no in-kernel transpose).
        s = jax.lax.dot_general(
            qrot_scr[...], kr.astype(jnp.bfloat16),
            dimension_numbers=(((1,), (1,)), ((), ())),
            preferred_element_type=jnp.float32)          # (tq, tk)
        if is_diag:
            # Causal mask only exists on the diagonal tile (tq == tk, same offsets).
            row = jax.lax.broadcasted_iota(jnp.int32, (tq, tk), 0)
            col = jax.lax.broadcasted_iota(jnp.int32, (tq, tk), 1)
            s = jnp.where(col <= row, s, NEG_INF)
        m_prev = m_scr[...]
        m_new = jnp.maximum(m_prev, jnp.max(s, axis=-1, keepdims=True))
        alpha = jnp.exp(m_prev - m_new)
        p = jnp.exp(s - m_new)                           # (tq, tk) f32
        l_scr[...] = alpha * l_scr[...] + jnp.sum(p, axis=-1, keepdims=True)
        acc_scr[...] = alpha * acc_scr[...] + jnp.dot(
            p.astype(jnp.bfloat16), v_ref[...], preferred_element_type=jnp.float32)
        m_scr[...] = m_new

    @pl.when(ki < qi)
    def _off_diag():
        _step(False)

    @pl.when(ki == qi)
    def _diag():
        _step(True)

    # --- finalize on the diagonal tile (last kv step of the group) ---
    @pl.when(ki == qi)
    def _done():
        inv_l = pl.reciprocal(l_scr[...], approx=True)   # EUP, frees VPU slots
        o_ref[...] = (acc_scr[...] * inv_l).astype(o_ref.dtype)


def _rope_tables(seq_len, d_head, base=10000.0):
    """cos/sin tables with rotate-half sign folded into sin and the softmax scale
    folded into the q-side tables.  Stored bf16 (operands are bf16 anyway)."""
    inv_freq = 1.0 / (base ** (jnp.arange(0, d_head, 2, dtype=jnp.float32) / d_head))
    t = jnp.arange(seq_len, dtype=jnp.float32)
    freqs = jnp.einsum("i,j->ij", t, inv_freq)
    emb = jnp.concatenate([freqs, freqs], axis=-1)       # (S, Dh)
    cos = jnp.cos(emb)
    half = d_head // 2
    sign = jnp.concatenate([-jnp.ones((half,)), jnp.ones((half,))]).astype(jnp.float32)
    sin_signed = jnp.sin(emb) * sign[None, :]
    scale = 1.0 / math.sqrt(d_head)
    return ((cos * scale).astype(jnp.bfloat16),
            (sin_signed * scale).astype(jnp.bfloat16),
            cos.astype(jnp.bfloat16),
            sin_signed.astype(jnp.bfloat16))


def pallas_attention(qkv2d, B, S, H, Dh, *, tile_cap=512):
    """qkv2d: (B*S, 3*H*Dh) packed projection output (bf16).

    Returns z: (B*S, H*Dh) causal rotary attention output (heads packed, bf16).
    """
    D = H * Dh
    dtype = qkv2d.dtype
    cos_q, sin_q, cos_k, sin_k = _rope_tables(S, Dh)

    tile = _pick_tile(S, tile_cap)                       # tq == tk
    nblk = S // tile

    # Lower-triangular (qi, ki) schedule: no dead above-diagonal grid steps.
    pairs = [(qi, ki) for qi in range(nblk) for ki in range(qi + 1)]
    qi_map = jnp.asarray([p[0] for p in pairs], dtype=jnp.int32)
    ki_map = jnp.asarray([p[1] for p in pairs], dtype=jnp.int32)
    n_tri = len(pairs)

    use_roll = (Dh % 128 == 0)
    kernel = functools.partial(_flash_attn_kernel, use_roll=use_roll)

    tbl_q = pl.BlockSpec((tile, Dh), lambda b, h, t, qm, km: (qm[t], 0))
    tbl_k = pl.BlockSpec((tile, Dh), lambda b, h, t, qm, km: (km[t], 0))
    scratch = [
        pltpu.VMEM((tile, Dh), jnp.bfloat16),            # rotated + scaled q
        pltpu.VMEM((tile, 1), jnp.float32),              # running max
        pltpu.VMEM((tile, 1), jnp.float32),              # running sum
        pltpu.VMEM((tile, Dh), jnp.float32),             # output accumulator
    ]
    cparams = pltpu.CompilerParams(
        dimension_semantics=("parallel", "parallel", "arbitrary"),
        vmem_limit_bytes=VMEM_LIMIT)

    if Dh % 128 == 0:
        # Fast path: heads are lane-offset (tile, Dh) blocks of the packed (B, S, 3D)
        # layout -> head-on-grid with zero HBM transposes.
        qkv3 = qkv2d.reshape(B, S, 3 * D)
        q_spec = pl.BlockSpec((None, tile, Dh), lambda b, h, t, qm, km: (b, qm[t], h))
        k_spec = pl.BlockSpec((None, tile, Dh), lambda b, h, t, qm, km: (b, km[t], H + h))
        v_spec = pl.BlockSpec((None, tile, Dh), lambda b, h, t, qm, km: (b, km[t], 2 * H + h))
        out_spec = pl.BlockSpec((None, tile, Dh), lambda b, h, t, qm, km: (b, qm[t], h))
        z = pl.pallas_call(
            kernel,
            out_shape=jax.ShapeDtypeStruct((B, S, D), dtype),
            grid_spec=pltpu.PrefetchScalarGridSpec(
                num_scalar_prefetch=2, grid=(B, H, n_tri),
                in_specs=[q_spec, k_spec, v_spec, tbl_q, tbl_q, tbl_k, tbl_k],
                out_specs=out_spec, scratch_shapes=scratch),
            compiler_params=cparams,
        )(qi_map, ki_map, qkv3, qkv3, qkv3, cos_q, sin_q, cos_k, sin_k)
        return z.reshape(B * S, D)

    # Small-Dh path (e.g. the unit test): one wrapper relayout to (3, B, H, S, Dh)
    # so every block is a contiguous (tile, Dh) slab (trailing dims stay legal).
    qkvh = qkv2d.reshape(B, S, 3, H, Dh).transpose(2, 0, 3, 1, 4)
    blk = (None, None, None, tile, Dh)
    q_spec = pl.BlockSpec(blk, lambda b, h, t, qm, km: (0, b, h, qm[t], 0))
    k_spec = pl.BlockSpec(blk, lambda b, h, t, qm, km: (1, b, h, km[t], 0))
    v_spec = pl.BlockSpec(blk, lambda b, h, t, qm, km: (2, b, h, km[t], 0))
    out_spec = pl.BlockSpec((None, None, tile, Dh), lambda b, h, t, qm, km: (b, h, qm[t], 0))
    z = pl.pallas_call(
        kernel,
        out_shape=jax.ShapeDtypeStruct((B, H, S, Dh), dtype),
        grid_spec=pltpu.PrefetchScalarGridSpec(
            num_scalar_prefetch=2, grid=(B, H, n_tri),
            in_specs=[q_spec, k_spec, v_spec, tbl_q, tbl_q, tbl_k, tbl_k],
            out_specs=out_spec, scratch_shapes=scratch),
        compiler_params=cparams,
    )(qi_map, ki_map, qkvh, qkvh, qkvh, cos_q, sin_q, cos_k, sin_k)
    return z.transpose(0, 2, 1, 3).reshape(B * S, D)


# ---------------------------------------------------------------------------
# Module forward
# ---------------------------------------------------------------------------

def attention_forward(x, w_qkv, w_o, n_head):
    """x: (B, S, D); w_qkv: (3D, D); w_o: (D, D) — PyTorch nn.Linear weight layout."""
    B, S, D = x.shape
    assert D % n_head == 0
    d_head = D // n_head
    assert d_head % 2 == 0, "rotary needs an even head dim"

    # qkv = self.qkv(x); bf16 output halves attention-side DMA bytes.
    qkv = pallas_linear(x.reshape(B * S, D), w_qkv, out_dtype=jnp.bfloat16)   # (B*S, 3D)
    z = pallas_attention(qkv, B, S, n_head, d_head)                           # (B*S, D) bf16
    out = pallas_linear(z, w_o, out_dtype=jnp.float32)                        # self.o(z)
    return out.reshape(B, S, D)


# ---------------------------------------------------------------------------
# Pure-JAX f32 reference (for correctness check)
# ---------------------------------------------------------------------------

def reference_forward(x, w_qkv, w_o, n_head):
    B, S, D = x.shape
    d_head = D // n_head
    qkv = x @ w_qkv.T
    qkv = qkv.reshape(B, S, 3, n_head, d_head)
    qkv = jnp.transpose(qkv, (2, 0, 3, 1, 4))
    q, k, v = qkv[0], qkv[1], qkv[2]

    inv_freq = 1.0 / (10000.0 ** (jnp.arange(0, d_head, 2, dtype=jnp.float32) / d_head))
    t = jnp.arange(S, dtype=jnp.float32)
    emb = jnp.concatenate([jnp.einsum("i,j->ij", t, inv_freq)] * 2, axis=-1)
    cos = jnp.cos(emb)[None, None]
    sin = jnp.sin(emb)[None, None]

    def rot_half(t_):
        t1, t2 = jnp.split(t_, 2, axis=-1)
        return jnp.concatenate([-t2, t1], axis=-1)

    q = q * cos + rot_half(q) * sin
    k = k * cos + rot_half(k) * sin

    s = jnp.einsum("bhqd,bhkd->bhqk", q, k) / math.sqrt(d_head)
    mask = jnp.tril(jnp.ones((S, S), dtype=bool))
    s = jnp.where(mask[None, None], s, -jnp.inf)
    p = jax.nn.softmax(s, axis=-1)
    z = jnp.einsum("bhqk,bhkd->bhqd", p, v)
    z = jnp.transpose(z, (0, 2, 1, 3)).reshape(B, S, D)
    return z @ w_o.T


# ---------------------------------------------------------------------------
# Main
# ---------------------------------------------------------------------------

if __name__ == "__main__":
    # Small config consistent with the module: n_head=4, d_model=32 (d_head=8), B=2, S=8
    B, S, D, H = 2, 8, 32, 4

    key = jax.random.PRNGKey(0)
    kx, kqkv, ko = jax.random.split(key, 3)

    x = jax.random.normal(kx, (B, S, D), dtype=jnp.float32)
    # PyTorch nn.Linear weight layout: (out_features, in_features), bias=False
    w_qkv = jax.random.normal(kqkv, (3 * D, D), dtype=jnp.float32) / math.sqrt(D)
    w_o = jax.random.normal(ko, (D, D), dtype=jnp.float32) / math.sqrt(D)

    fwd = jax.jit(attention_forward, static_argnums=(3,))
    out = jax.block_until_ready(fwd(x, w_qkv, w_o, H))

    ref = reference_forward(x, w_qkv, w_o, H)
    assert out.shape == (B, S, D)
    max_err = float(jnp.max(jnp.abs(out - ref)))
    rel_err = float(jnp.linalg.norm(out - ref) / jnp.linalg.norm(ref))
    # Tolerance reflects bf16 MXU operands + approximate reciprocal vs. the f32 reference.
    assert max_err < 1e-1 and rel_err < 3e-2, f"mismatch vs reference: max={max_err}, rel={rel_err}"

    print("KERNEL_OK")
</pallas_src>

<mosaic_0001>
module attributes {stable_mosaic.version = 11 : i64} {
  func.func @_linear_acc_kernel(%arg0: i32, %arg1: i32, %arg2: i32, %arg3: memref<16x32xf32, #tpu.memory_space<vmem>>, %arg4: memref<96x32xf32, #tpu.memory_space<vmem>>, %arg5: memref<16x96xbf16, #tpu.memory_space<vmem>>, %arg6: memref<16x96xf32, #tpu.memory_space<vmem>>) attributes {dimension_semantics = [#tpu.dimension_semantics<parallel>, #tpu.dimension_semantics<parallel>, #tpu.dimension_semantics<arbitrary>], iteration_bounds = array<i64: 1, 1, 1>, scalar_prefetch = 0 : i64, scratch_operands = 1 : i64, tpu.core_type = #tpu.core_type<tc>, window_params = [{transform_indices = @transform_0, window_bounds = array<i64: 16, 32>}, {transform_indices = @transform_1, window_bounds = array<i64: 96, 32>}, {transform_indices = @transform_2, window_bounds = array<i64: 16, 96>}]} {
    %c0_i32 = arith.constant 0 : i32
    %0 = arith.cmpi eq, %arg2, %c0_i32 : i32
    %1 = arith.extui %0 : i1 to i32
    %c0_i32_0 = arith.constant 0 : i32
    %2 = arith.cmpi ne, %1, %c0_i32_0 : i32
    scf.if %2 {
      %cst_10 = arith.constant 0.000000e+00 : f32
      %14 = vector.broadcast %cst_10 : f32 to vector<16x96xf32>
      %c0_11 = arith.constant 0 : index
      %c0_12 = arith.constant 0 : index
      %15 = vector.load %arg6[%c0_11, %c0_12] : memref<16x96xf32, #tpu.memory_space<vmem>>, vector<16x96xf32>
      tpu.vector_store %arg6[%c0_11, %c0_12], %14 {strides = array<i32>} : memref<16x96xf32, #tpu.memory_space<vmem>>, vector<16x96xf32>,
    } else {
    }
    %c0 = arith.constant 0 : index
    %c0_1 = arith.constant 0 : index
    %3 = vector.load %arg6[%c0, %c0_1] : memref<16x96xf32, #tpu.memory_space<vmem>>, vector<16x96xf32>
    %c0_2 = arith.constant 0 : index
    %c0_3 = arith.constant 0 : index
    %4 = vector.load %arg3[%c0_2, %c0_3] : memref<16x32xf32, #tpu.memory_space<vmem>>, vector<16x32xf32>
    %c0_4 = arith.constant 0 : index
    %c0_5 = arith.constant 0 : index
    %5 = vector.load %arg4[%c0_4, %c0_5] : memref<96x32xf32, #tpu.memory_space<vmem>>, vector<96x32xf32>
    %6 = arith.truncf %4 : vector<16x32xf32> to vector<16x32xbf16>
    %7 = arith.truncf %5 : vector<96x32xf32> to vector<96x32xbf16>
    %cst = arith.constant dense<0.000000e+00> : vector<16x96xf32>
    %8 = tpu.matmul %6, %7, %cst {dimension_numbers = #tpu.dot_dimension_numbers<[1], [1], [0], [0], [0, 0, 1, 0], [], []>} : vector<16x32xbf16>, vector<96x32xbf16>, vector<16x96xf32> -> vector<16x96xf32>
    %9 = arith.addf %3, %8 : vector<16x96xf32>
    %c0_6 = arith.constant 0 : index
    %c0_7 = arith.constant 0 : index
    %10 = vector.load %arg6[%c0_6, %c0_7] : memref<16x96xf32, #tpu.memory_space<vmem>>, vector<16x96xf32>
    tpu.vector_store %arg6[%c0_6, %c0_7], %9 {strides = array<i32>} : memref<16x96xf32, #tpu.memory_space<vmem>>, vector<16x96xf32>,
    %c0_i32_8 = arith.constant 0 : i32
    %11 = arith.cmpi eq, %arg2, %c0_i32_8 : i32
    %12 = arith.extui %11 : i1 to i32
    %c0_i32_9 = arith.constant 0 : i32
    %13 = arith.cmpi ne, %12, %c0_i32_9 : i32
    scf.if %13 {
      %c0_10 = arith.constant 0 : index
      %c0_11 = arith.constant 0 : index
      %14 = vector.load %arg6[%c0_10, %c0_11] : memref<16x96xf32, #tpu.memory_space<vmem>>, vector<16x96xf32>
      %15 = arith.truncf %14 : vector<16x96xf32> to vector<16x96xbf16>
      %c0_12 = arith.constant 0 : index
      %c0_13 = arith.constant 0 : index
      %16 = vector.load %arg5[%c0_12, %c0_13] : memref<16x96xbf16, #tpu.memory_space<vmem>>, vector<16x96xbf16>
      tpu.vector_store %arg5[%c0_12, %c0_13], %15 {strides = array<i32>} : memref<16x96xbf16, #tpu.memory_space<vmem>>, vector<16x96xbf16>,
    } else {
    }
    return
  }
  func.func @transform_0(%arg0: i32, %arg1: i32, %arg2: i32) -> (i32, i32) {
    %c0_i32 = arith.constant 0 : i32
    return %arg0, %arg2 : i32, i32
  }
  func.func @transform_1(%arg0: i32, %arg1: i32, %arg2: i32) -> (i32, i32) {
    %c0_i32 = arith.constant 0 : i32
    return %arg1, %arg2 : i32, i32
  }
  func.func @transform_2(%arg0: i32, %arg1: i32, %arg2: i32) -> (i32, i32) {
    %c0_i32 = arith.constant 0 : i32
    return %arg0, %arg1 : i32, i32
  }
}

module attributes {stable_mosaic.version = 11 : i64} {
  func.func @_flash_attn_kernel(%arg0: i32, %arg1: i32, %arg2: i32, %arg3: memref<1xi32, #tpu.memory_space<smem>>, %arg4: memref<1xi32, #tpu.memory_space<smem>>, %arg5: memref<1x1x1x8x8xbf16, #tpu.memory_space<vmem>>, %arg6: memref<1x1x1x8x8xbf16, #tpu.memory_space<vmem>>, %arg7: memref<1x1x1x8x8xbf16, #tpu.memory_space<vmem>>, %arg8: memref<8x8xbf16, #tpu.memory_space<vmem>>, %arg9: memref<8x8xbf16, #tpu.memory_space<vmem>>, %arg10: memref<8x8xbf16, #tpu.memory_space<vmem>>, %arg11: memref<8x8xbf16, #tpu.memory_space<vmem>>, %arg12: memref<1x1x8x8xbf16, #tpu.memory_space<vmem>>, %arg13: memref<8x8xbf16, #tpu.memory_space<vmem>>, %arg14: memref<8x1xf32, #tpu.memory_space<vmem>>, %arg15: memref<8x1xf32, #tpu.memory_space<vmem>>, %arg16: memref<8x8xf32, #tpu.memory_space<vmem>>) attributes {dimension_semantics = [#tpu.dimension_semantics<parallel>, #tpu.dimension_semantics<parallel>, #tpu.dimension_semantics<arbitrary>], iteration_bounds = array<i64: 2, 4, 1>, scalar_prefetch = 2 : i64, scratch_operands = 4 : i64, tpu.core_type = #tpu.core_type<tc>, window_params = [{transform_indices = @transform_0, window_bounds = array<i64: 1, 1, 1, 8, 8>}, {transform_indices = @transform_1, window_bounds = array<i64: 1, 1, 1, 8, 8>}, {transform_indices = @transform_2, window_bounds = array<i64: 1, 1, 1, 8, 8>}, {transform_indices = @transform_3, window_bounds = array<i64: 8, 8>}, {transform_indices = @transform_4, window_bounds = array<i64: 8, 8>}, {transform_indices = @transform_5, window_bounds = array<i64: 8, 8>}, {transform_indices = @transform_6, window_bounds = array<i64: 8, 8>}, {transform_indices = @transform_7, window_bounds = array<i64: 1, 1, 8, 8>}]} {
    %0 = arith.index_cast %arg2 : i32 to index
    %1 = memref.load %arg3[%0] : memref<1xi32, #tpu.memory_space<smem>>
    %2 = arith.index_cast %arg2 : i32 to index
    %3 = memref.load %arg4[%2] : memref<1xi32, #tpu.memory_space<smem>>
    %c0_i32 = arith.constant 0 : i32
    %4 = arith.cmpi eq, %3, %c0_i32 : i32
    %5 = arith.extui %4 : i1 to i32
    %c0_i32_0 = arith.constant 0 : i32
    %6 = arith.cmpi ne, %5, %c0_i32_0 : i32
    scf.if %6 {
      %c0 = arith.constant 0 : index
      %c0_4 = arith.constant 0 : index
      %c0_5 = arith.constant 0 : index
      %c0_6 = arith.constant 0 : index
      %c0_7 = arith.constant 0 : index
      %16 = vector.load %arg5[%c0, %c0_4, %c0_5, %c0_6, %c0_7] : memref<1x1x1x8x8xbf16, #tpu.memory_space<vmem>>, vector<1x1x1x8x8xbf16>
      %17 = vector.shape_cast %16 : vector<1x1x1x8x8xbf16> to vector<8x8xbf16>
      %18 = arith.extf %17 : vector<8x8xbf16> to vector<8x8xf32>
      %c0_8 = arith.constant 0 : index
      %c0_9 = arith.constant 0 : index
      %19 = vector.load %arg8[%c0_8, %c0_9] : memref<8x8xbf16, #tpu.memory_space<vmem>>, vector<8x8xbf16>
      %20 = arith.extf %19 : vector<8x8xbf16> to vector<8x8xf32>
      %c0_10 = arith.constant 0 : index
      %c0_11 = arith.constant 0 : index
      %21 = vector.load %arg9[%c0_10, %c0_11] : memref<8x8xbf16, #tpu.memory_space<vmem>>, vector<8x8xbf16>
      %22 = arith.extf %21 : vector<8x8xbf16> to vector<8x8xf32>
      %23 = vector.extract_strided_slice %18 {offsets = [0, 4], sizes = [8, 4], strides = [1, 1]} : vector<8x8xf32> to vector<8x4xf32>
      %24 = vector.extract_strided_slice %18 {offsets = [0, 0], sizes = [8, 4], strides = [1, 1]} : vector<8x8xf32> to vector<8x4xf32>
      %25 = tpu.concatenate %23, %24 in 1 : vector<8x4xf32>, vector<8x4xf32> -> vector<8x8xf32>
      %26 = arith.mulf %18, %20 : vector<8x8xf32>
      %27 = arith.mulf %25, %22 : vector<8x8xf32>
      %28 = arith.addf %26, %27 : vector<8x8xf32>
      %29 = arith.truncf %28 : vector<8x8xf32> to vector<8x8xbf16>
      %c0_12 = arith.constant 0 : index
      %c0_13 = arith.constant 0 : index
      %30 = vector.load %arg13[%c0_12, %c0_13] : memref<8x8xbf16, #tpu.memory_space<vmem>>, vector<8x8xbf16>
      tpu.vector_store %arg13[%c0_12, %c0_13], %29 {strides = array<i32>} : memref<8x8xbf16, #tpu.memory_space<vmem>>, vector<8x8xbf16>,
      %cst = arith.constant -1.000000e+30 : f32
      %31 = vector.broadcast %cst : f32 to vector<8x1xf32>
      %c0_14 = arith.constant 0 : index
      %c0_15 = arith.constant 0 : index
      %32 = vector.load %arg14[%c0_14, %c0_15] : memref<8x1xf32, #tpu.memory_space<vmem>>, vector<8x1xf32>
      tpu.vector_store %arg14[%c0_14, %c0_15], %31 {strides = array<i32>} : memref<8x1xf32, #tpu.memory_space<vmem>>, vector<8x1xf32>,
      %cst_16 = arith.constant 0.000000e+00 : f32
      %33 = vector.broadcast %cst_16 : f32 to vector<8x1xf32>
      %c0_17 = arith.constant 0 : index
      %c0_18 = arith.constant 0 : index
      %34 = vector.load %arg15[%c0_17, %c0_18] : memref<8x1xf32, #tpu.memory_space<vmem>>, vector<8x1xf32>
      tpu.vector_store %arg15[%c0_17, %c0_18], %33 {strides = array<i32>} : memref<8x1xf32, #tpu.memory_space<vmem>>, vector<8x1xf32>,
      %cst_19 = arith.constant 0.000000e+00 : f32
      %35 = vector.broadcast %cst_19 : f32 to vector<8x8xf32>
      %c0_20 = arith.constant 0 : index
      %c0_21 = arith.constant 0 : index
      %36 = vector.load %arg16[%c0_20, %c0_21] : memref<8x8xf32, #tpu.memory_space<vmem>>, vector<8x8xf32>
      tpu.vector_store %arg16[%c0_20, %c0_21], %35 {strides = array<i32>} : memref<8x8xf32, #tpu.memory_space<vmem>>, vector<8x8xf32>,
    } else {
    }
    %7 = arith.cmpi slt, %3, %1 : i32
    %8 = arith.extui %7 : i1 to i32
    %c0_i32_1 = arith.constant 0 : i32
    %9 = arith.cmpi ne, %8, %c0_i32_1 : i32
    scf.if %9 {
      %c0 = arith.constant 0 : index
      %c0_4 = arith.constant 0 : index
      %c0_5 = arith.constant 0 : index
      %c0_6 = arith.constant 0 : index
      %c0_7 = arith.constant 0 : index
      %16 = vector.load %arg6[%c0, %c0_4, %c0_5, %c0_6, %c0_7] : memref<1x1x1x8x8xbf16, #tpu.memory_space<vmem>>, vector<1x1x1x8x8xbf16>
      %17 = vector.shape_cast %16 : vector<1x1x1x8x8xbf16> to vector<8x8xbf16>
      %18 = arith.extf %17 : vector<8x8xbf16> to vector<8x8xf32>
      %c0_8 = arith.constant 0 : index
      %c0_9 = arith.constant 0 : index
      %19 = vector.load %arg10[%c0_8, %c0_9] : memref<8x8xbf16, #tpu.memory_space<vmem>>, vector<8x8xbf16>
      %20 = arith.extf %19 : vector<8x8xbf16> to vector<8x8xf32>
      %c0_10 = arith.constant 0 : index
      %c0_11 = arith.constant 0 : index
      %21 = vector.load %arg11[%c0_10, %c0_11] : memref<8x8xbf16, #tpu.memory_space<vmem>>, vector<8x8xbf16>
      %22 = arith.extf %21 : vector<8x8xbf16> to vector<8x8xf32>
      %23 = vector.extract_strided_slice %18 {offsets = [0, 4], sizes = [8, 4], strides = [1, 1]} : vector<8x8xf32> to vector<8x4xf32>
      %24 = vector.extract_strided_slice %18 {offsets = [0, 0], sizes = [8, 4], strides = [1, 1]} : vector<8x8xf32> to vector<8x4xf32>
      %25 = tpu.concatenate %23, %24 in 1 : vector<8x4xf32>, vector<8x4xf32> -> vector<8x8xf32>
      %26 = arith.mulf %18, %20 : vector<8x8xf32>
      %27 = arith.mulf %25, %22 : vector<8x8xf32>
      %28 = arith.addf %26, %27 : vector<8x8xf32>
      %c0_12 = arith.constant 0 : index
      %c0_13 = arith.constant 0 : index
      %29 = vector.load %arg13[%c0_12, %c0_13] : memref<8x8xbf16, #tpu.memory_space<vmem>>, vector<8x8xbf16>
      %30 = arith.truncf %28 : vector<8x8xf32> to vector<8x8xbf16>
      %cst = arith.constant dense<0.000000e+00> : vector<8x8xf32>
      %31 = tpu.matmul %29, %30, %cst {dimension_numbers = #tpu.dot_dimension_numbers<[1], [1], [0], [0], [0, 0, 1, 0], [], []>} : vector<8x8xbf16>, vector<8x8xbf16>, vector<8x8xf32> -> vector<8x8xf32>
      %c0_14 = arith.constant 0 : index
      %c0_15 = arith.constant 0 : index
      %32 = vector.load %arg14[%c0_14, %c0_15] : memref<8x1xf32, #tpu.memory_space<vmem>>, vector<8x1xf32>
      %cst_16 = arith.constant dense<0xFF800000> : vector<8xf32>
      %33 = vector.multi_reduction <maximumf>, %31, %cst_16 [1] : vector<8x8xf32> to vector<8xf32>
      %34 = vector.shape_cast %33 : vector<8xf32> to vector<8x1xf32>
      %35 = arith.maximumf %32, %34 : vector<8x1xf32>
      %36 = arith.subf %32, %35 : vector<8x1xf32>
      %37 = math.exp %36 : vector<8x1xf32>
      %38 = vector.broadcast %35 : vector<8x1xf32> to vector<8x8xf32>
      %39 = arith.subf %31, %38 : vector<8x8xf32>
      %40 = math.exp %39 : vector<8x8xf32>
      %c0_17 = arith.constant 0 : index
      %c0_18 = arith.constant 0 : index
      %41 = vector.load %arg15[%c0_17, %c0_18] : memref<8x1xf32, #tpu.memory_space<vmem>>, vector<8x1xf32>
      %42 = arith.mulf %37, %41 : vector<8x1xf32>
      %cst_19 = arith.constant dense<0.000000e+00> : vector<8xf32>
      %43 = vector.multi_reduction <add>, %40, %cst_19 [1] : vector<8x8xf32> to vector<8xf32>
      %44 = vector.shape_cast %43 : vector<8xf32> to vector<8x1xf32>
      %45 = arith.addf %42, %44 : vector<8x1xf32>
      %c0_20 = arith.constant 0 : index
      %c0_21 = arith.constant 0 : index
      %46 = vector.load %arg15[%c0_20, %c0_21] : memref<8x1xf32, #tpu.memory_space<vmem>>, vector<8x1xf32>
      tpu.vector_store %arg15[%c0_20, %c0_21], %45 {strides = array<i32>} : memref<8x1xf32, #tpu.memory_space<vmem>>, vector<8x1xf32>,
      %c0_22 = arith.constant 0 : index
      %c0_23 = arith.constant 0 : index
      %47 = vector.load %arg16[%c0_22, %c0_23] : memref<8x8xf32, #tpu.memory_space<vmem>>, vector<8x8xf32>
      %48 = vector.broadcast %37 : vector<8x1xf32> to vector<8x8xf32>
      %49 = arith.mulf %48, %47 : vector<8x8xf32>
      %50 = arith.truncf %40 : vector<8x8xf32> to vector<8x8xbf16>
      %c0_24 = arith.constant 0 : index
      %c0_25 = arith.constant 0 : index
      %c0_26 = arith.constant 0 : index
      %c0_27 = arith.constant 0 : index
      %c0_28 = arith.constant 0 : index
      %51 = vector.load %arg7[%c0_24, %c0_25, %c0_26, %c0_27, %c0_28] : memref<1x1x1x8x8xbf16, #tpu.memory_space<vmem>>, vector<1x1x1x8x8xbf16>
      %52 = vector.shape_cast %51 : vector<1x1x1x8x8xbf16> to vector<8x8xbf16>
      %cst_29 = arith.constant dense<0.000000e+00> : vector<8x8xf32>
      %53 = tpu.matmul %50, %52, %cst_29 {dimension_numbers = #tpu.dot_dimension_numbers<[1], [0], [0], [1], [0, 0, 1, 1], [], []>} : vector<8x8xbf16>, vector<8x8xbf16>, vector<8x8xf32> -> vector<8x8xf32>
      %54 = arith.addf %49, %53 : vector<8x8xf32>
      %c0_30 = arith.constant 0 : index
      %c0_31 = arith.constant 0 : index
      %55 = vector.load %arg16[%c0_30, %c0_31] : memref<8x8xf32, #tpu.memory_space<vmem>>, vector<8x8xf32>
      tpu.vector_store %arg16[%c0_30, %c0_31], %54 {strides = array<i32>} : memref<8x8xf32, #tpu.memory_space<vmem>>, vector<8x8xf32>,
      %c0_32 = arith.constant 0 : index
      %c0_33 = arith.constant 0 : index
      %56 = vector.load %arg14[%c0_32, %c0_33] : memref<8x1xf32, #tpu.memory_space<vmem>>, vector<8x1xf32>
      tpu.vector_store %arg14[%c0_32, %c0_33], %35 {strides = array<i32>} : memref<8x1xf32, #tpu.memory_space<vmem>>, vector<8x1xf32>,
    } else {
    }
    %10 = arith.cmpi eq, %3, %1 : i32
    %11 = arith.extui %10 : i1 to i32
    %c0_i32_2 = arith.constant 0 : i32
    %12 = arith.cmpi ne, %11, %c0_i32_2 : i32
    scf.if %12 {
      %c0 = arith.constant 0 : index
      %c0_4 = arith.constant 0 : index
      %c0_5 = arith.constant 0 : index
      %c0_6 = arith.constant 0 : index
      %c0_7 = arith.constant 0 : index
      %16 = vector.load %arg6[%c0, %c0_4, %c0_5, %c0_6, %c0_7] : memref<1x1x1x8x8xbf16, #tpu.memory_space<vmem>>, vector<1x1x1x8x8xbf16>
      %17 = vector.shape_cast %16 : vector<1x1x1x8x8xbf16> to vector<8x8xbf16>
      %18 = arith.extf %17 : vector<8x8xbf16> to vector<8x8xf32>
      %c0_8 = arith.constant 0 : index
      %c0_9 = arith.constant 0 : index
      %19 = vector.load %arg10[%c0_8, %c0_9] : memref<8x8xbf16, #tpu.memory_space<vmem>>, vector<8x8xbf16>
      %20 = arith.extf %19 : vector<8x8xbf16> to vector<8x8xf32>
      %c0_10 = arith.constant 0 : index
      %c0_11 = arith.constant 0 : index
      %21 = vector.load %arg11[%c0_10, %c0_11] : memref<8x8xbf16, #tpu.memory_space<vmem>>, vector<8x8xbf16>
      %22 = arith.extf %21 : vector<8x8xbf16> to vector<8x8xf32>
      %23 = vector.extract_strided_slice %18 {offsets = [0, 4], sizes = [8, 4], strides = [1, 1]} : vector<8x8xf32> to vector<8x4xf32>
      %24 = vector.extract_strided_slice %18 {offsets = [0, 0], sizes = [8, 4], strides = [1, 1]} : vector<8x8xf32> to vector<8x4xf32>
      %25 = tpu.concatenate %23, %24 in 1 : vector<8x4xf32>, vector<8x4xf32> -> vector<8x8xf32>
      %26 = arith.mulf %18, %20 : vector<8x8xf32>
      %27 = arith.mulf %25, %22 : vector<8x8xf32>
      %28 = arith.addf %26, %27 : vector<8x8xf32>
      %c0_12 = arith.constant 0 : index
      %c0_13 = arith.constant 0 : index
      %29 = vector.load %arg13[%c0_12, %c0_13] : memref<8x8xbf16, #tpu.memory_space<vmem>>, vector<8x8xbf16>
      %30 = arith.truncf %28 : vector<8x8xf32> to vector<8x8xbf16>
      %cst = arith.constant dense<0.000000e+00> : vector<8x8xf32>
      %31 = tpu.matmul %29, %30, %cst {dimension_numbers = #tpu.dot_dimension_numbers<[1], [1], [0], [0], [0, 0, 1, 0], [], []>} : vector<8x8xbf16>, vector<8x8xbf16>, vector<8x8xf32> -> vector<8x8xf32>
      %32 = tpu.iota {dimensions = array<i32: 0>} : vector<8x8xi32>
      %33 = tpu.iota {dimensions = array<i32: 1>} : vector<8x8xi32>
      %34 = arith.cmpi sle, %33, %32 : vector<8x8xi32>
      %cst_14 = arith.constant -1.000000e+30 : f32
      %35 = vector.broadcast %cst_14 : f32 to vector<8x8xf32>
      %36 = arith.select %34, %31, %35 : vector<8x8xi1>, vector<8x8xf32>
      %c0_15 = arith.constant 0 : index
      %c0_16 = arith.constant 0 : index
      %37 = vector.load %arg14[%c0_15, %c0_16] : memref<8x1xf32, #tpu.memory_space<vmem>>, vector<8x1xf32>
      %cst_17 = arith.constant dense<0xFF800000> : vector<8xf32>
      %38 = vector.multi_reduction <maximumf>, %36, %cst_17 [1] : vector<8x8xf32> to vector<8xf32>
      %39 = vector.shape_cast %38 : vector<8xf32> to vector<8x1xf32>
      %40 = arith.maximumf %37, %39 : vector<8x1xf32>
      %41 = arith.subf %37, %40 : vector<8x1xf32>
      %42 = math.exp %41 : vector<8x1xf32>
      %43 = vector.broadcast %40 : vector<8x1xf32> to vector<8x8xf32>
      %44 = arith.subf %36, %43 : vector<8x8xf32>
      %45 = math.exp %44 : vector<8x8xf32>
      %c0_18 = arith.constant 0 : index
      %c0_19 = arith.constant 0 : index
      %46 = vector.load %arg15[%c0_18, %c0_19] : memref<8x1xf32, #tpu.memory_space<vmem>>, vector<8x1xf32>
      %47 = arith.mulf %42, %46 : vector<8x1xf32>
      %cst_20 = arith.constant dense<0.000000e+00> : vector<8xf32>
      %48 = vector.multi_reduction <add>, %45, %cst_20 [1] : vector<8x8xf32> to vector<8xf32>
      %49 = vector.shape_cast %48 : vector<8xf32> to vector<8x1xf32>
      %50 = arith.addf %47, %49 : vector<8x1xf32>
      %c0_21 = arith.constant 0 : index
      %c0_22 = arith.constant 0 : index
      %51 = vector.load %arg15[%c0_21, %c0_22] : memref<8x1xf32, #tpu.memory_space<vmem>>, vector<8x1xf32>
      tpu.vector_store %arg15[%c0_21, %c0_22], %50 {strides = array<i32>} : memref<8x1xf32, #tpu.memory_space<vmem>>, vector<8x1xf32>,
      %c0_23 = arith.constant 0 : index
      %c0_24 = arith.constant 0 : index
      %52 = vector.load %arg16[%c0_23, %c0_24] : memref<8x8xf32, #tpu.memory_space<vmem>>, vector<8x8xf32>
      %53 = vector.broadcast %42 : vector<8x1xf32> to vector<8x8xf32>
      %54 = arith.mulf %53, %52 : vector<8x8xf32>
      %55 = arith.truncf %45 : vector<8x8xf32> to vector<8x8xbf16>
      %c0_25 = arith.constant 0 : index
      %c0_26 = arith.constant 0 : index
      %c0_27 = arith.constant 0 : index
      %c0_28 = arith.constant 0 : index
      %c0_29 = arith.constant 0 : index
      %56 = vector.load %arg7[%c0_25, %c0_26, %c0_27, %c0_28, %c0_29] : memref<1x1x1x8x8xbf16, #tpu.memory_space<vmem>>, vector<1x1x1x8x8xbf16>
      %57 = vector.shape_cast %56 : vector<1x1x1x8x8xbf16> to vector<8x8xbf16>
      %cst_30 = arith.constant dense<0.000000e+00> : vector<8x8xf32>
      %58 = tpu.matmul %55, %57, %cst_30 {dimension_numbers = #tpu.dot_dimension_numbers<[1], [0], [0], [1], [0, 0, 1, 1], [], []>} : vector<8x8xbf16>, vector<8x8xbf16>, vector<8x8xf32> -> vector<8x8xf32>
      %59 = arith.addf %54, %58 : vector<8x8xf32>
      %c0_31 = arith.constant 0 : index
      %c0_32 = arith.constant 0 : index
      %60 = vector.load %arg16[%c0_31, %c0_32] : memref<8x8xf32, #tpu.memory_space<vmem>>, vector<8x8xf32>
      tpu.vector_store %arg16[%c0_31, %c0_32], %59 {strides = array<i32>} : memref<8x8xf32, #tpu.memory_space<vmem>>, vector<8x8xf32>,
      %c0_33 = arith.constant 0 : index
      %c0_34 = arith.constant 0 : index
      %61 = vector.load %arg14[%c0_33, %c0_34] : memref<8x1xf32, #tpu.memory_space<vmem>>, vector<8x1xf32>
      tpu.vector_store %arg14[%c0_33, %c0_34], %40 {strides = array<i32>} : memref<8x1xf32, #tpu.memory_space<vmem>>, vector<8x1xf32>,
    } else {
    }
    %13 = arith.cmpi eq, %3, %1 : i32
    %14 = arith.extui %13 : i1 to i32
    %c0_i32_3 = arith.constant 0 : i32
    %15 = arith.cmpi ne, %14, %c0_i32_3 : i32
    scf.if %15 {
      %c0 = arith.constant 0 : index
      %c0_4 = arith.constant 0 : index
      %16 = vector.load %arg15[%c0, %c0_4] : memref<8x1xf32, #tpu.memory_space<vmem>>, vector<8x1xf32>
      %17 = tpu.reciprocal %16 {approx = true} : vector<8x1xf32> -> vector<8x1xf32>
      %c0_5 = arith.constant 0 : index
      %c0_6 = arith.constant 0 : index
      %18 = vector.load %arg16[%c0_5, %c0_6] : memref<8x8xf32, #tpu.memory_space<vmem>>, vector<8x8xf32>
      %19 = vector.broadcast %17 : vector<8x1xf32> to vector<8x8xf32>
      %20 = arith.mulf %18, %19 : vector<8x8xf32>
      %21 = arith.truncf %20 : vector<8x8xf32> to vector<8x8xbf16>
      %c0_7 = arith.constant 0 : index
      %c0_8 = arith.constant 0 : index
      %c0_9 = arith.constant 0 : index
      %c0_10 = arith.constant 0 : index
      %22 = vector.load %arg12[%c0_7, %c0_8, %c0_9, %c0_10] : memref<1x1x8x8xbf16, #tpu.memory_space<vmem>>, vector<1x1x8x8xbf16>
      %23 = vector.shape_cast %22 : vector<1x1x8x8xbf16> to vector<8x8xbf16>
      %24 = vector.shape_cast %21 : vector<8x8xbf16> to vector<1x1x8x8xbf16>
      tpu.vector_store %arg12[%c0_7, %c0_8, %c0_9, %c0_10], %24 {strides = array<i32>} : memref<1x1x8x8xbf16, #tpu.memory_space<vmem>>, vector<1x1x8x8xbf16>,
    } else {
    }
    return
  }
  func.func @transform_0(%arg0: i32, %arg1: i32, %arg2: i32, %arg3: memref<1xi32, #tpu.memory_space<smem>>, %arg4: memref<1xi32, #tpu.memory_space<smem>>) -> (i32, i32, i32, i32, i32) {
    %0 = arith.index_cast %arg2 : i32 to index
    %1 = memref.load %arg3[%0] : memref<1xi32, #tpu.memory_space<smem>>
    %c0_i32 = arith.constant 0 : i32
    %c0_i32_0 = arith.constant 0 : i32
    %c0_i32_1 = arith.constant 0 : i32
    return %c0_i32, %arg0, %arg1, %1, %c0_i32_0 : i32, i32, i32, i32, i32
  }
  func.func @transform_1(%arg0: i32, %arg1: i32, %arg2: i32, %arg3: memref<1xi32, #tpu.memory_space<smem>>, %arg4: memref<1xi32, #tpu.memory_space<smem>>) -> (i32, i32, i32, i32, i32) {
    %0 = arith.index_cast %arg2 : i32 to index
    %1 = memref.load %arg4[%0] : memref<1xi32, #tpu.memory_space<smem>>
    %c1_i32 = arith.constant 1 : i32
    %c0_i32 = arith.constant 0 : i32
    %c0_i32_0 = arith.constant 0 : i32
    return %c1_i32, %arg0, %arg1, %1, %c0_i32 : i32, i32, i32, i32, i32
  }
  func.func @transform_2(%arg0: i32, %arg1: i32, %arg2: i32, %arg3: memref<1xi32, #tpu.memory_space<smem>>, %arg4: memref<1xi32, #tpu.memory_space<smem>>) -> (i32, i32, i32, i32, i32) {
    %0 = arith.index_cast %arg2 : i32 to index
    %1 = memref.load %arg4[%0] : memref<1xi32, #tpu.memory_space<smem>>
    %c2_i32 = arith.constant 2 : i32
    %c0_i32 = arith.constant 0 : i32
    %c0_i32_0 = arith.constant 0 : i32
    return %c2_i32, %arg0, %arg1, %1, %c0_i32 : i32, i32, i32, i32, i32
  }
  func.func @transform_3(%arg0: i32, %arg1: i32, %arg2: i32, %arg3: memref<1xi32, #tpu.memory_space<smem>>, %arg4: memref<1xi32, #tpu.memory_space<smem>>) -> (i32, i32) {
    %0 = arith.index_cast %arg2 : i32 to index
    %1 = memref.load %arg3[%0] : memref<1xi32, #tpu.memory_space<smem>>
    %c0_i32 = arith.constant 0 : i32
    %c0_i32_0 = arith.constant 0 : i32
    return %1, %c0_i32 : i32, i32
  }
  func.func @transform_4(%arg0: i32, %arg1: i32, %arg2: i32, %arg3: memref<1xi32, #tpu.memory_space<smem>>, %arg4: memref<1xi32, #tpu.memory_space<smem>>) -> (i32, i32) {
    %0 = arith.index_cast %arg2 : i32 to index
    %1 = memref.load %arg3[%0] : memref<1xi32, #tpu.memory_space<smem>>
    %c0_i32 = arith.constant 0 : i32
    %c0_i32_0 = arith.constant 0 : i32
    return %1, %c0_i32 : i32, i32
  }
  func.func @transform_5(%arg0: i32, %arg1: i32, %arg2: i32, %arg3: memref<1xi32, #tpu.memory_space<smem>>, %arg4: memref<1xi32, #tpu.memory_space<smem>>) -> (i32, i32) {
    %0 = arith.index_cast %arg2 : i32 to index
    %1 = memref.load %arg4[%0] : memref<1xi32, #tpu.memory_space<smem>>
    %c0_i32 = arith.constant 0 : i32
    %c0_i32_0 = arith.constant 0 : i32
    return %1, %c0_i32 : i32, i32
  }
  func.func @transform_6(%arg0: i32, %arg1: i32, %arg2: i32, %arg3: memref<1xi32, #tpu.memory_space<smem>>, %arg4: memref<1xi32, #tpu.memory_space<smem>>) -> (i32, i32) {
    %0 = arith.index_cast %arg2 : i32 to index
    %1 = memref.load %arg4[%0] : memref<1xi32, #tpu.memory_space<smem>>
    %c0_i32 = arith.constant 0 : i32
    %c0_i32_0 = arith.constant 0 : i32
    return %1, %c0_i32 : i32, i32
  }
  func.func @transform_7(%arg0: i32, %arg1: i32, %arg2: i32, %arg3: memref<1xi32, #tpu.memory_space<smem>>, %arg4: memref<1xi32, #tpu.memory_space<smem>>) -> (i32, i32, i32, i32) {
    %0 = arith.index_cast %arg2 : i32 to index
    %1 = memref.load %arg3[%0] : memref<1xi32, #tpu.memory_space<smem>>
    %c0_i32 = arith.constant 0 : i32
    %c0_i32_0 = arith.constant 0 : i32
    return %arg0, %arg1, %1, %c0_i32 : i32, i32, i32, i32
  }
}

module attributes {stable_mosaic.version = 11 : i64} {
  func.func @_linear_inplace_kernel(%arg0: i32, %arg1: i32, %arg2: i32, %arg3: memref<16x32xbf16, #tpu.memory_space<vmem>>, %arg4: memref<32x32xf32, #tpu.memory_space<vmem>>, %arg5: memref<16x32xf32, #tpu.memory_space<vmem>>) attributes {dimension_semantics = [#tpu.dimension_semantics<parallel>, #tpu.dimension_semantics<parallel>, #tpu.dimension_semantics<arbitrary>], iteration_bounds = array<i64: 1, 1, 1>, scalar_prefetch = 0 : i64, scratch_operands = 0 : i64, tpu.core_type = #tpu.core_type<tc>, window_params = [{transform_indices = @transform_0, window_bounds = array<i64: 16, 32>}, {transform_indices = @transform_1, window_bounds = array<i64: 32, 32>}, {transform_indices = @transform_2, window_bounds = array<i64: 16, 32>}]} {
    %c0_i32 = arith.constant 0 : i32
    %0 = arith.cmpi eq, %arg2, %c0_i32 : i32
    %1 = arith.extui %0 : i1 to i32
    %c0_i32_0 = arith.constant 0 : i32
    %2 = arith.cmpi ne, %1, %c0_i32_0 : i32
    scf.if %2 {
      %cst_8 = arith.constant 0.000000e+00 : f32
      %10 = vector.broadcast %cst_8 : f32 to vector<16x32xf32>
      %c0_9 = arith.constant 0 : index
      %c0_10 = arith.constant 0 : index
      %11 = vector.load %arg5[%c0_9, %c0_10] : memref<16x32xf32, #tpu.memory_space<vmem>>, vector<16x32xf32>
      tpu.vector_store %arg5[%c0_9, %c0_10], %10 {strides = array<i32>} : memref<16x32xf32, #tpu.memory_space<vmem>>, vector<16x32xf32>,
    } else {
    }
    %c0 = arith.constant 0 : index
    %c0_1 = arith.constant 0 : index
    %3 = vector.load %arg5[%c0, %c0_1] : memref<16x32xf32, #tpu.memory_space<vmem>>, vector<16x32xf32>
    %c0_2 = arith.constant 0 : index
    %c0_3 = arith.constant 0 : index
    %4 = vector.load %arg3[%c0_2, %c0_3] : memref<16x32xbf16, #tpu.memory_space<vmem>>, vector<16x32xbf16>
    %c0_4 = arith.constant 0 : index
    %c0_5 = arith.constant 0 : index
    %5 = vector.load %arg4[%c0_4, %c0_5] : memref<32x32xf32, #tpu.memory_space<vmem>>, vector<32x32xf32>
    %6 = arith.truncf %5 : vector<32x32xf32> to vector<32x32xbf16>
    %cst = arith.constant dense<0.000000e+00> : vector<16x32xf32>
    %7 = tpu.matmul %4, %6, %cst {dimension_numbers = #tpu.dot_dimension_numbers<[1], [1], [0], [0], [0, 0, 1, 0], [], []>} : vector<16x32xbf16>, vector<32x32xbf16>, vector<16x32xf32> -> vector<16x32xf32>
    %8 = arith.addf %3, %7 : vector<16x32xf32>
    %c0_6 = arith.constant 0 : index
    %c0_7 = arith.constant 0 : index
    %9 = vector.load %arg5[%c0_6, %c0_7] : memref<16x32xf32, #tpu.memory_space<vmem>>, vector<16x32xf32>
    tpu.vector_store %arg5[%c0_6, %c0_7], %8 {strides = array<i32>} : memref<16x32xf32, #tpu.memory_space<vmem>>, vector<16x32xf32>,
    return
  }
  func.func @transform_0(%arg0: i32, %arg1: i32, %arg2: i32) -> (i32, i32) {
    %c0_i32 = arith.constant 0 : i32
    return %arg0, %arg2 : i32, i32
  }
  func.func @transform_1(%arg0: i32, %arg1: i32, %arg2: i32) -> (i32, i32) {
    %c0_i32 = arith.constant 0 : i32
    return %arg1, %arg2 : i32, i32
  }
  func.func @transform_2(%arg0: i32, %arg1: i32, %arg2: i32) -> (i32, i32) {
    %c0_i32 = arith.constant 0 : i32
    return %arg0, %arg1 : i32, i32
  }
}

</mosaic_0001>

<llo_original>
// kernel: attention_forward.3
$region0: #{attention_forward.3}
  #allocation0 [shape = 'u32[]', space=smem, size = 0x4, offset = 0x4, fixed_abs, tag = 'smem constant byte address 0x4 - core index']
  #allocation1 [shape = 'u32[144,128]{1,0:T(1,128)}', space=vmem, size = 0x12000, scoped, tag = 'internal scratch']
  #allocation2 [shape = 'f32[16,96]{1,0:T(8,128)}', space=vmem, size = 0x2000, scoped, tag = 'scratch operand']
  %s0 = inlined_call_operand.vmem [shape: f32[16,32], index: 0, kind: input, shape index: {}]
  %s1 = inlined_call_operand.vmem [shape: f32[96,32], index: 1, kind: input, shape index: {}]
  %s2 = inlined_call_operand.vmem [shape: bf16[16,96], index: 2, kind: output, shape index: {}]
  %s3 = sld [smem:[#allocation0]]
  $region26: #{attention_forward.3} parent=0
    _
  %s5 = ssub.s32 1, %s3
  %s6 = scalar_select 0, %s5, %s3
  // Predicated region
  $region2: #{attention_forward.3} parent=0 // pred_check
    _
  $region3: #{attention_forward.3} parent=0 // pred_check_branch
    %8 = sbr.rel (0) target = $region5
  $region4: #{attention_forward.3} parent=0 // pred_region
    _
  $region5: #{attention_forward.3} parent=0 // pred_fallthru
    _
  // Predicated region
  $region6: #{attention_forward.3} parent=0 // pred_check
    _
  $region7: #{attention_forward.3} parent=0 // pred_check_branch
    %10 = sbr.rel (0) target = $region9
  $region8: #{attention_forward.3} parent=0 // pred_region
    _
  $region9: #{attention_forward.3} parent=0 // pred_fallthru
    _
  %p12 = scmp.eq.s32.totalorder 0, 0
  // Predicated region
  $region10: #{attention_forward.3} parent=0 // pred_check
    %p13 = pneg %p12
  $region11: #{attention_forward.3} parent=0 // pred_check_branch
    %15 = sbr.rel (%p13) target = $region13
  $region12: #{attention_forward.3} parent=0 // pred_region
    %vm16 = vcmask 785408
    %17 = vst.msk [vmem:[#allocation2] sm:$0xff] %vm16, 0.0
    %18 = vst.msk [vmem:[#allocation2 + $0x8] sm:$0xff] %vm16, 0.0
  $region13: #{attention_forward.3} parent=0 // pred_fallthru
    _
  %v19 = vld [vmem:[#allocation2] sm:$0xff]
  %v20 = vld [vmem:[#allocation2 + $0x8] sm:$0xff]
  %v21 = vld [vmem:[%s0] sm:$0xff]
  %v22 = vld [vmem:[%s0 + $0x8] sm:$0xff]
  %v23 = vld [vmem:[%s1] sm:$0xff]
  %v24 = vld [vmem:[%s1 + $0x8] sm:$0xff]
  %v25 = vld [vmem:[%s1 + $0x10] sm:$0xff]
  %v26 = vld [vmem:[%s1 + $0x18] sm:$0xff]
  %v27 = vld [vmem:[%s1 + $0x20] sm:$0xff]
  %v28 = vld [vmem:[%s1 + $0x28] sm:$0xff]
  %v29 = vld [vmem:[%s1 + $0x30] sm:$0xff]
  %v30 = vld [vmem:[%s1 + $0x38] sm:$0xff]
  %v31 = vld [vmem:[%s1 + $0x40] sm:$0xff]
  %v32 = vld [vmem:[%s1 + $0x48] sm:$0xff]
  %v33 = vld [vmem:[%s1 + $0x50] sm:$0xff]
  %v34 = vld [vmem:[%s1 + $0x58] sm:$0xff]
  %v35 = vpack.c.bf16 %v22, %v21
  %v36 = vpack.c.bf16 %v24, %v23
  %v37 = vpack.c.bf16 %v26, %v25
  %v38 = vpack.c.bf16 %v28, %v27
  %v39 = vpack.c.bf16 %v30, %v29
  %v40 = vpack.c.bf16 %v32, %v31
  %v41 = vpack.c.bf16 %v34, %v33
  %vm42 = vcmask 261120
  %v44 = vsel %vm42, %v35, 0
  %v47 = vsel %vm42, %v36, 0
  %v50 = vsel %vm42, %v37, 0
  %v53 = vsel %vm42, %v38, 0
  %v56 = vsel %vm42, %v39, 0
  %v59 = vsel %vm42, %v40, 0
  %v62 = vsel %vm42, %v41, 0
  %64 = vmatprep.subr.bf16.mxu0 0
  %65 = vmatpush1.bf16.xpose.msra.mxu0 %v47
  %66 = vmatprep.subr.bf16.mxu0 0
  %67 = vmatpush1.bf16.xpose.msra.mxu0 %v50
  %68 = vmatprep.subr.bf16.mxu0 0
  %69 = vmatpush1.bf16.xpose.msra.mxu0 %v53
  %70 = vmatprep.subr.bf16.mxu0 0
  %71 = vmatpush1.bf16.xpose.msra.mxu0 %v56
  %72 = vmatprep.subr.bf16.mxu0 0
  %73 = vmatpush1.bf16.xpose.msra.mxu0 %v59
  %74 = vmatprep.subr.bf16.mxu0 0
  %75 = vmatpush1.bf16.xpose.msra.mxu0 %v62
  %76 = vmatprep.subr.bf16.mxu0 0
  %77 = vmatpush1.bf16.xpose.msra.mxu0 0
  %78 = vmatprep.subr.bf16.mxu0 0
  %79 = vmatpush1.bf16.xpose.msra.mxu0 0
  %80 = vmatprep.subr.bf16.mxu0 0
  %81 = vmatpush1.bf16.xpose.msra.mxu0 0
  %82 = vmatprep.subr.bf16.mxu0 0
  %83 = vmatpush1.bf16.xpose.msra.mxu0 0
  %84 = vmatprep.subr.bf16.mxu0 0
  %85 = vmatpush1.bf16.xpose.msra.mxu0 0
  %86 = vmatprep.subr.bf16.mxu0 0
  %87 = vmatpush1.bf16.xpose.msra.mxu0 0
  %88 = vmatprep.subr.bf16.mxu0 0
  %89 = vmatpush1.bf16.xpose.msra.mxu0 0
  %90 = vmatprep.subr.bf16.mxu0 0
  %91 = vmatpush1.bf16.xpose.msra.mxu0 0
  %92 = vmatprep.subr.bf16.mxu0 0
  %93 = vmatpush1.bf16.xpose.msra.mxu0 0
  %94 = vmatprep.subr.bf16.mxu0 0
  %95 = vmatpush1.bf16.xpose.msra.mxu0 0
  %96 = vmatprep.mubr.bf16.mxu0 0
  %97 = vmatmul.mubr.bf16.gmra.mrb[0].mxu0 %v44
  %v98 = vpop.f32.mrb[0].mxu0
  %v99 = vadd.f32 0.0, %v98
  %v100 = vpop.f32.mrb[0].mxu0
  %v101 = vpop.f32.mrb[0].mxu0
  %v102 = vadd.f32 0.0, %v101
  %v103 = vpop.f32.mrb[0].mxu0
  %104 = vdwg.mxu0
  %v105 = vadd.f32 %v19, %v99
  %v106 = vadd.f32 %v20, %v102
  %vm107 = vcmask 785408
  %108 = vst.msk [vmem:[#allocation2] sm:$0xff] %vm107, %v105
  %109 = vst.msk [vmem:[#allocation2 + $0x8] sm:$0xff] %vm107, %v106
  // Predicated region
  $region14: #{attention_forward.3} parent=0 // pred_check
    %p110 = pneg %p12
  $region15: #{attention_forward.3} parent=0 // pred_check_branch
    %112 = sbr.rel (%p110) target = $region17
  $region16: #{attention_forward.3} parent=0 // pred_region
    %v113 = vld [vmem:[#allocation2] sm:$0xff]
    %v114 = vld [vmem:[#allocation2 + $0x8] sm:$0xff]
    %v115 = vpack.c.bf16 %v114, %v113
    %v117 = vunpack.c.l.b16 %v115
    %v118 = vunpack.c.h.b16 %v115
    %v119 = vpack.c.b16 %v117, %v117
    %v120 = vpack.c.b16 %v118, %v118
    %vm123 = vcmask 781312
    %124 = vst.msk [vmem:[%s2] sm:$0xf] %vm123, %v119
    %125 = vst.msk [vmem:[%s2 + $0x4] sm:$0xf] %vm123, %v120
  $region17: #{attention_forward.3} parent=0 // pred_fallthru
    _
  // Predicated region
  $region18: #{attention_forward.3} parent=0 // pred_check
    _
  $region19: #{attention_forward.3} parent=0 // pred_check_branch
    %127 = sbr.rel (0) target = $region21
  $region20: #{attention_forward.3} parent=0 // pred_region
    _
  $region21: #{attention_forward.3} parent=0 // pred_fallthru
    _
  // Predicated region
  $region22: #{attention_forward.3} parent=0 // pred_check
    _
  $region23: #{attention_forward.3} parent=0 // pred_check_branch
    %129 = sbr.rel (0) target = $region25
  $region24: #{attention_forward.3} parent=0 // pred_region
    _
  $region25: #{attention_forward.3} parent=0 // pred_fallthru
    _

// kernel: attention_forward.5
$region0: #{attention_forward.5}
  #allocation0 [shape = 'u32[]', space=smem, size = 0x4, offset = 0x4, fixed_abs, tag = 'smem constant byte address 0x4 - core index']
  #allocation1 [shape = 'u32[144,128]{1,0:T(1,128)}', space=vmem, size = 0x12000, scoped, tag = 'internal scratch']
  %s0 = inlined_call_operand.vmem [shape: bf16[16,32], index: 0, kind: input, shape index: {}]
  %s1 = inlined_call_operand.vmem [shape: f32[32,32], index: 1, kind: input, shape index: {}]
  %s2 = inlined_call_operand.hbm [shape: f32[16,32], index: 2, kind: output, shape index: {}]
  %s3 = sld [smem:[#allocation0]]
  $region22: #{attention_forward.5} parent=0
    _
  %s5 = ssub.s32 1, %s3
  %s6 = scalar_select 0, %s5, %s3
  $region1: #{attention_forward.5} parent=0
    #allocation2 [shape = 'u8[8192]{0}', space=vmem, size = 0x2000, scoped, tag = 'output window, operand 0, single buffered']
    #allocation3 [shape = 's32[1]{0}', space=sflag, size = 0x4, scoped, tag = 'scoped memory for attention_forward.5']
    %7 = vsyncpa [#allocation3], 0
    // Predicated region
    $region2: #{attention_forward.5} parent=1 // pred_check
      _
    $region3: #{attention_forward.5} parent=1 // pred_check_branch
      %9 = sbr.rel (0) target = $region5
    $region4: #{attention_forward.5} parent=1 // pred_region
      _
    $region5: #{attention_forward.5} parent=1 // pred_fallthru
      _
    // Predicated region
    $region6: #{attention_forward.5} parent=1 // pred_check
      _
    $region7: #{attention_forward.5} parent=1 // pred_check_branch
      %11 = sbr.rel (0) target = $region9
    $region8: #{attention_forward.5} parent=1 // pred_region
      _
    $region9: #{attention_forward.5} parent=1 // pred_fallthru
      _
    %p13 = scmp.eq.s32.totalorder 0, 0
    // Predicated region
    $region10: #{attention_forward.5} parent=1 // pred_check
      %p14 = pneg %p13
    $region11: #{attention_forward.5} parent=1 // pred_check_branch
      %16 = sbr.rel (%p14) target = $region13
    $region12: #{attention_forward.5} parent=1 // pred_region
      %vm17 = vcmask 261120
      %18 = vst.msk [vmem:[#allocation2] sm:$0xff] %vm17, 0.0
      %19 = vst.msk [vmem:[#allocation2 + $0x8] sm:$0xff] %vm17, 0.0
    $region13: #{attention_forward.5} parent=1 // pred_fallthru
      _
    %v20 = vld [vmem:[#allocation2] sm:$0xff]
    %v21 = vld [vmem:[#allocation2 + $0x8] sm:$0xff]
    %v22 = vld [vmem:[%s0] sm:$0xf]
    %v23 = vld [vmem:[%s0 + $0x4] sm:$0xf]
    %v24 = vld [vmem:[%s1] sm:$0xff]
    %v25 = vld [vmem:[%s1 + $0x8] sm:$0xff]
    %v26 = vld [vmem:[%s1 + $0x10] sm:$0xff]
    %v27 = vld [vmem:[%s1 + $0x18] sm:$0xff]
    %v28 = vpack.c.bf16 %v25, %v24
    %v29 = vpack.c.bf16 %v27, %v26
    %v32 = vunpack.c.l.b16 %v22
    %v33 = vunpack.c.l.b16 %v23
    %v34 = vpack.c.b16 %v33, %v32
    %vm35 = vcmask 261120
    %v37 = vsel %vm35, %v34, 0
    %v40 = vsel %vm35, %v28, 0
    %v43 = vsel %vm35, %v29, 0
    %45 = vmatprep.subr.bf16.mxu0 0
    %46 = vmatpush1.bf16.xpose.msra.mxu0 %v40
    %47 = vmatprep.subr.bf16.mxu0 0
    %48 = vmatpush1.bf16.xpose.msra.mxu0 %v43
    %49 = vmatprep.subr.bf16.mxu0 0
    %50 = vmatpush1.bf16.xpose.msra.mxu0 0
    %51 = vmatprep.subr.bf16.mxu0 0
    %52 = vmatpush1.bf16.xpose.msra.mxu0 0
    %53 = vmatprep.subr.bf16.mxu0 0
    %54 = vmatpush1.bf16.xpose.msra.mxu0 0
    %55 = vmatprep.subr.bf16.mxu0 0
    %56 = vmatpush1.bf16.xpose.msra.mxu0 0
    %57 = vmatprep.subr.bf16.mxu0 0
    %58 = vmatpush1.bf16.xpose.msra.mxu0 0
    %59 = vmatprep.subr.bf16.mxu0 0
    %60 = vmatpush1.bf16.xpose.msra.mxu0 0
    %61 = vmatprep.subr.bf16.mxu0 0
    %62 = vmatpush1.bf16.xpose.msra.mxu0 0
    %63 = vmatprep.subr.bf16.mxu0 0
    %64 = vmatpush1.bf16.xpose.msra.mxu0 0
    %65 = vmatprep.subr.bf16.mxu0 0
    %66 = vmatpush1.bf16.xpose.msra.mxu0 0
    %67 = vmatprep.subr.bf16.mxu0 0
    %68 = vmatpush1.bf16.xpose.msra.mxu0 0
    %69 = vmatprep.subr.bf16.mxu0 0
    %70 = vmatpush1.bf16.xpose.msra.mxu0 0
    %71 = vmatprep.subr.bf16.mxu0 0
    %72 = vmatpush1.bf16.xpose.msra.mxu0 0
    %73 = vmatprep.subr.bf16.mxu0 0
    %74 = vmatpush1.bf16.xpose.msra.mxu0 0
    %75 = vmatprep.subr.bf16.mxu0 0
    %76 = vmatpush1.bf16.xpose.msra.mxu0 0
    %77 = vmatprep.mubr.bf16.mxu0 0
    %78 = vmatmul.mubr.bf16.gmra.mrb[0].mxu0 %v37
    %v79 = vpop.f32.mrb[0].mxu0
    %v80 = vadd.f32 0.0, %v79
    %v81 = vpop.f32.mrb[0].mxu0
    %v82 = vpop.f32.mrb[0].mxu0
    %v83 = vadd.f32 0.0, %v82
    %v84 = vpop.f32.mrb[0].mxu0
    %85 = vdwg.mxu0
    %v86 = vadd.f32 %v20, %v80
    %v87 = vadd.f32 %v21, %v83
    %88 = vst.msk [vmem:[#allocation2] sm:$0xff] %vm35, %v86
    %89 = vst.msk [vmem:[#allocation2 + $0x8] sm:$0xff] %vm35, %v87
    // Predicated region
    $region14: #{attention_forward.5} parent=1 // pred_check
      _
    $region15: #{attention_forward.5} parent=1 // pred_check_branch
      %91 = sbr.rel (0) target = $region17
    $region16: #{attention_forward.5} parent=1 // pred_region
      %s93 = ssub.s32 256, 256
      %94 = vsyncadd [#allocation3], %s93
      %s95 = sshll.u32 [#allocation2], 4
      %s96 = int_to_ptr.vmem [resolvable:$true] %s95
      %101 = dma.vmem_to_hbm [thread:$0]  %s96, 256, %s2, [#allocation3], 128, 128, 8
    $region17: #{attention_forward.5} parent=1 // pred_fallthru
      _
    // Predicated region
    $region18: #{attention_forward.5} parent=1 // pred_check
      _
    $region19: #{attention_forward.5} parent=1 // pred_check_branch
      %103 = sbr.rel (0) target = $region21
    $region20: #{attention_forward.5} parent=1 // pred_region
      %104 = dma.done [#allocation3], 256
    $region21: #{attention_forward.5} parent=1 // pred_fallthru
      _
    %105 = vsyncpa [#allocation3], 1

// kernel: attention_forward.4
$region0: #{attention_forward.4}
  #allocation0 [shape = 'u32[]', space=smem, size = 0x4, offset = 0x4, fixed_abs, tag = 'smem constant byte address 0x4 - core index']
  #allocation1 [shape = 'u32[144,128]{1,0:T(1,128)}', space=vmem, size = 0x12000, scoped, tag = 'internal scratch']
  #allocation2 [shape = 'bf16[8,8]{1,0:T(8,128)(2,1)}', space=vmem, size = 0x800, scoped, tag = 'scratch operand']
  #allocation3 [shape = 'f32[8,1]{1,0:T(8,128)}', space=vmem, size = 0x1000, scoped, tag = 'scratch operand']
  #allocation4 [shape = 'f32[8,1]{1,0:T(8,128)}', space=vmem, size = 0x1000, scoped, tag = 'scratch operand']
  #allocation5 [shape = 'f32[8,8]{1,0:T(8,128)}', space=vmem, size = 0x1000, scoped, tag = 'scratch operand']
  #allocation6 [shape = 's32[1]{0}', space=sflag, size = 0x4, scoped, tag = 'scoped memory for attention_forward.4']
  #allocation7 [shape = 's32[1]{0:T(128)S(6)}', space=smem, size = 0x200, scoped, tag = 'prefetched SMEM operand 0']
  #allocation8 [shape = 's32[1]{0:T(128)S(6)}', space=smem, size = 0x200, scoped, tag = 'prefetched SMEM operand 1']
  %s0 = inlined_call_operand.<no memory space> [shape: s32[1], index: 0, kind: input, shape index: {}, may-alias: {0,1}]
  %s1 = inlined_call_operand.<no memory space> [shape: s32[1], index: 1, kind: input, shape index: {}, may-alias: {0,1}]
  %s2 = inlined_call_operand.vmem [shape: bf16[3,2,4,8,8], index: 2, kind: input, shape index: {}, may-alias: {2,3,4}]
  %s3 = inlined_call_operand.vmem [shape: bf16[3,2,4,8,8], index: 3, kind: input, shape index: {}, may-alias: {2,3,4}]
  %s4 = inlined_call_operand.vmem [shape: bf16[3,2,4,8,8], index: 4, kind: input, shape index: {}, may-alias: {2,3,4}]
  %s5 = inlined_call_operand.vmem [shape: bf16[8,8], index: 5, kind: input, shape index: {}]
  %s6 = inlined_call_operand.vmem [shape: bf16[8,8], index: 6, kind: input, shape index: {}]
  %s7 = inlined_call_operand.vmem [shape: bf16[8,8], index: 7, kind: input, shape index: {}]
  %s8 = inlined_call_operand.vmem [shape: bf16[8,8], index: 8, kind: input, shape index: {}]
  %s9 = inlined_call_operand.vmem [shape: bf16[2,4,8,8], index: 9, kind: output, shape index: {}]
  %s10 = sld [smem:[#allocation0]]
  $region73: #{attention_forward.4} parent=0
    _
  %s12 = ssub.s32 1, %s10
  %s13 = scalar_select 0, %s12, %s10
  %14 = sst [smem:[#allocation7]] %s0
  %15 = sst [smem:[#allocation8]] %s1
  loop: start=0, step=1, limit=10
  $region2: #{attention_forward.4} parent=0 // loop_pre_header
    _
  $region3: #{attention_forward.4} parent=0 // loop_header
    %s17 = sphi 0, %s21
    %p18 = scmp.ge.s32.totalorder %s17, 10
    %s24 = sphi 0, %s43
    %s25 = sphi 0, %s39
    %s26 = sphi 0, %s35
    %s27 = sphi 0, %s24
    %s28 = sphi 0, %s25
    %s29 = sphi 0, %s26
    %s30 = sphi 0, %s27
    %s31 = sphi 0, %s28
    %s32 = sphi 0, %s29
    %s52 = sphi 0, %s54
    %s55 = sphi 0, %s52
    %s56 = sphi 0, %s55
    %s72 = sphi 0, %s56
    %s84 = sphi 0, %s86
    %s87 = sphi 0, %s84
    %s88 = sphi 0, %s87
    %s104 = sphi 0, %s88
    %s116 = sphi 0, %s118
    %s119 = sphi 0, %s116
    %s120 = sphi 0, %s119
    %s136 = sphi 0, %s120
    %s144 = sphi 0, %s146
    %s147 = sphi 0, %s144
    %s148 = sphi 0, %s147
    %s164 = sphi 0, %s148
    %s172 = sphi 0, %s174
    %s175 = sphi 0, %s172
    %s176 = sphi 0, %s175
    %s192 = sphi 0, %s176
    %s200 = sphi 0, %s202
    %s203 = sphi 0, %s200
    %s204 = sphi 0, %s203
    %s220 = sphi 0, %s204
    %s228 = sphi 0, %s230
    %s231 = sphi 0, %s228
    %s232 = sphi 0, %s231
    %s248 = sphi 0, %s232
    %s260 = sphi 0, %s262
    %s263 = sphi 0, %s260
    %s264 = sphi 0, %s263
    %s280 = sphi 0, %s264
  $region4: #{attention_forward.4} parent=0 // loop_header_branch
    %20 = sbr.rel (%p18) target = $region8
  $region5: #{attention_forward.4} parent=0 // loop_body
    %s22 = ssub.s32 %s17, 1
    %s23 = ssub.s32 %s17, 2
    %s33 = sadd.s32 1, %s26
    %p34 = scmp.ge.s32.totalorder %s33, 1
    %s35 = scalar_select %p34, 0, %s33
    %s36 = sadd.s32 1, %s25
    %s37 = scalar_select %p34, %s36, %s25
    %p38 = scmp.ge.s32.totalorder %s37, 4
    %s39 = scalar_select %p38, 0, %s37
    %s40 = sadd.s32 1, %s24
    %s41 = scalar_select %p38, %s40, %s24
    %p42 = scmp.ge.s32.totalorder %s41, 2
    %s43 = scalar_select %p42, 0, %s41
    %s44 = sld [smem:[#allocation7 + %s26]]
    %s45 = sld [smem:[#allocation7 + %s35]]
    %s46 = ssub.s32 %s24, %s43
    %s47 = ssub.s32 %s25, %s39
    %s48 = sor.u32 %s46, %s47
    %s49 = ssub.s32 %s44, %s45
    %s50 = sor.u32 %s48, %s49
    %p51 = scmp.eq.s32.totalorder %s50, 0
    %s53 = sadd.s32 %s52, 1
    %s54 = scalar_select %p51, %s52, %s53
    %p57 = pneg %p51
    %p58 = scmp.eq.s32.totalorder %s17, 7
    %p59 = por %p57, %p58
    %p60 = scmp.ne.s32.totalorder %s52, %s55
    %p61 = scmp.eq.s32.totalorder %s17, 0
    %p62 = por %p60, %p61
    %p63 = scmp.ne.s32.totalorder %s52, %s55
    %p64 = scmp.eq.s32.totalorder %s22, 7
    %p65 = por %p63, %p64
    %p66 = scmp.ne.s32.totalorder %s55, %s56
    %p67 = scmp.eq.s32.totalorder %s22, 0
    %p68 = por %p66, %p67
    %p69 = scmp.ne.s32.totalorder %s55, %s56
    %p70 = scmp.eq.s32.totalorder %s23, 7
    %p71 = por %p69, %p70
    %p73 = scmp.ne.s32.totalorder %s56, %s72
    %p74 = scmp.eq.s32.totalorder %s23, 0
    %p75 = por %p73, %p74
    %s76 = sld [smem:[#allocation8 + %s26]]
    %s77 = sld [smem:[#allocation8 + %s35]]
    %s78 = ssub.s32 %s24, %s43
    %s79 = ssub.s32 %s25, %s39
    %s80 = sor.u32 %s78, %s79
    %s81 = ssub.s32 %s76, %s77
    %s82 = sor.u32 %s80, %s81
    %p83 = scmp.eq.s32.totalorder %s82, 0
    %s85 = sadd.s32 %s84, 1
    %s86 = scalar_select %p83, %s84, %s85
    %p89 = pneg %p83
    %p90 = scmp.eq.s32.totalorder %s17, 7
    %p91 = por %p89, %p90
    %p92 = scmp.ne.s32.totalorder %s84, %s87
    %p93 = scmp.eq.s32.totalorder %s17, 0
    %p94 = por %p92, %p93
    %p95 = scmp.ne.s32.totalorder %s84, %s87
    %p96 = scmp.eq.s32.totalorder %s22, 7
    %p97 = por %p95, %p96
    %p98 = scmp.ne.s32.totalorder %s87, %s88
    %p99 = scmp.eq.s32.totalorder %s22, 0
    %p100 = por %p98, %p99
    %p101 = scmp.ne.s32.totalorder %s87, %s88
    %p102 = scmp.eq.s32.totalorder %s23, 7
    %p103 = por %p101, %p102
    %p105 = scmp.ne.s32.totalorder %s88, %s104
    %p106 = scmp.eq.s32.totalorder %s23, 0
    %p107 = por %p105, %p106
    %s108 = sld [smem:[#allocation8 + %s26]]
    %s109 = sld [smem:[#allocation8 + %s35]]
    %s110 = ssub.s32 %s24, %s43
    %s111 = ssub.s32 %s25, %s39
    %s112 = sor.u32 %s110, %s111
    %s113 = ssub.s32 %s108, %s109
    %s114 = sor.u32 %s112, %s113
    %p115 = scmp.eq.s32.totalorder %s114, 0
    %s117 = sadd.s32 %s116, 1
    %s118 = scalar_select %p115, %s116, %s117
    %p121 = pneg %p115
    %p122 = scmp.eq.s32.totalorder %s17, 7
    %p123 = por %p121, %p122
    %p124 = scmp.ne.s32.totalorder %s116, %s119
    %p125 = scmp.eq.s32.totalorder %s17, 0
    %p126 = por %p124, %p125
    %p127 = scmp.ne.s32.totalorder %s116, %s119
    %p128 = scmp.eq.s32.totalorder %s22, 7
    %p129 = por %p127, %p128
    %p130 = scmp.ne.s32.totalorder %s119, %s120
    %p131 = scmp.eq.s32.totalorder %s22, 0
    %p132 = por %p130, %p131
    %p133 = scmp.ne.s32.totalorder %s119, %s120
    %p134 = scmp.eq.s32.totalorder %s23, 7
    %p135 = por %p133, %p134
    %p137 = scmp.ne.s32.totalorder %s120, %s136
    %p138 = scmp.eq.s32.totalorder %s23, 0
    %p139 = por %p137, %p138
    %s140 = sld [smem:[#allocation7 + %s26]]
    %s141 = sld [smem:[#allocation7 + %s35]]
    %s142 = ssub.s32 %s140, %s141
    %p143 = scmp.eq.s32.totalorder %s142, 0
    %s145 = sadd.s32 %s144, 1
    %s146 = scalar_select %p143, %s144, %s145
    %p149 = pneg %p143
    %p150 = scmp.eq.s32.totalorder %s17, 7
    %p151 = por %p149, %p150
    %p152 = scmp.ne.s32.totalorder %s144, %s147
    %p153 = scmp.eq.s32.totalorder %s17, 0
    %p154 = por %p152, %p153
    %p155 = scmp.ne.s32.totalorder %s144, %s147
    %p156 = scmp.eq.s32.totalorder %s22, 7
    %p157 = por %p155, %p156
    %p158 = scmp.ne.s32.totalorder %s147, %s148
    %p159 = scmp.eq.s32.totalorder %s22, 0
    %p160 = por %p158, %p159
    %p161 = scmp.ne.s32.totalorder %s147, %s148
    %p162 = scmp.eq.s32.totalorder %s23, 7
    %p163 = por %p161, %p162
    %p165 = scmp.ne.s32.totalorder %s148, %s164
    %p166 = scmp.eq.s32.totalorder %s23, 0
    %p167 = por %p165, %p166
    %s168 = sld [smem:[#allocation7 + %s26]]
    %s169 = sld [smem:[#allocation7 + %s35]]
    %s170 = ssub.s32 %s168, %s169
    %p171 = scmp.eq.s32.totalorder %s170, 0
    %s173 = sadd.s32 %s172, 1
    %s174 = scalar_select %p171, %s172, %s173
    %p177 = pneg %p171
    %p178 = scmp.eq.s32.totalorder %s17, 7
    %p179 = por %p177, %p178
    %p180 = scmp.ne.s32.totalorder %s172, %s175
    %p181 = scmp.eq.s32.totalorder %s17, 0
    %p182 = por %p180, %p181
    %p183 = scmp.ne.s32.totalorder %s172, %s175
    %p184 = scmp.eq.s32.totalorder %s22, 7
    %p185 = por %p183, %p184
    %p186 = scmp.ne.s32.totalorder %s175, %s176
    %p187 = scmp.eq.s32.totalorder %s22, 0
    %p188 = por %p186, %p187
    %p189 = scmp.ne.s32.totalorder %s175, %s176
    %p190 = scmp.eq.s32.totalorder %s23, 7
    %p191 = por %p189, %p190
    %p193 = scmp.ne.s32.totalorder %s176, %s192
    %p194 = scmp.eq.s32.totalorder %s23, 0
    %p195 = por %p193, %p194
    %s196 = sld [smem:[#allocation8 + %s26]]
    %s197 = sld [smem:[#allocation8 + %s35]]
    %s198 = ssub.s32 %s196, %s197
    %p199 = scmp.eq.s32.totalorder %s198, 0
    %s201 = sadd.s32 %s200, 1
    %s202 = scalar_select %p199, %s200, %s201
    %p205 = pneg %p199
    %p206 = scmp.eq.s32.totalorder %s17, 7
    %p207 = por %p205, %p206
    %p208 = scmp.ne.s32.totalorder %s200, %s203
    %p209 = scmp.eq.s32.totalorder %s17, 0
    %p210 = por %p208, %p209
    %p211 = scmp.ne.s32.totalorder %s200, %s203
    %p212 = scmp.eq.s32.totalorder %s22, 7
    %p213 = por %p211, %p212
    %p214 = scmp.ne.s32.totalorder %s203, %s204
    %p215 = scmp.eq.s32.totalorder %s22, 0
    %p216 = por %p214, %p215
    %p217 = scmp.ne.s32.totalorder %s203, %s204
    %p218 = scmp.eq.s32.totalorder %s23, 7
    %p219 = por %p217, %p218
    %p221 = scmp.ne.s32.totalorder %s204, %s220
    %p222 = scmp.eq.s32.totalorder %s23, 0
    %p223 = por %p221, %p222
    %s224 = sld [smem:[#allocation8 + %s26]]
    %s225 = sld [smem:[#allocation8 + %s35]]
    %s226 = ssub.s32 %s224, %s225
    %p227 = scmp.eq.s32.totalorder %s226, 0
    %s229 = sadd.s32 %s228, 1
    %s230 = scalar_select %p227, %s228, %s229
    %p233 = pneg %p227
    %p234 = scmp.eq.s32.totalorder %s17, 7
    %p235 = por %p233, %p234
    %p236 = scmp.ne.s32.totalorder %s228, %s231
    %p237 = scmp.eq.s32.totalorder %s17, 0
    %p238 = por %p236, %p237
    %p239 = scmp.ne.s32.totalorder %s228, %s231
    %p240 = scmp.eq.s32.totalorder %s22, 7
    %p241 = por %p239, %p240
    %p242 = scmp.ne.s32.totalorder %s231, %s232
    %p243 = scmp.eq.s32.totalorder %s22, 0
    %p244 = por %p242, %p243
    %p245 = scmp.ne.s32.totalorder %s231, %s232
    %p246 = scmp.eq.s32.totalorder %s23, 7
    %p247 = por %p245, %p246
    %p249 = scmp.ne.s32.totalorder %s232, %s248
    %p250 = scmp.eq.s32.totalorder %s23, 0
    %p251 = por %p249, %p250
    %s252 = sld [smem:[#allocation7 + %s26]]
    %s253 = sld [smem:[#allocation7 + %s35]]
    %s254 = ssub.s32 %s24, %s43
    %s255 = ssub.s32 %s25, %s39
    %s256 = sor.u32 %s254, %s255
    %s257 = ssub.s32 %s252, %s253
    %s258 = sor.u32 %s256, %s257
    %p259 = scmp.eq.s32.totalorder %s258, 0
    %s261 = sadd.s32 %s260, 1
    %s262 = scalar_select %p259, %s260, %s261
    %p265 = pneg %p259
    %p266 = scmp.eq.s32.totalorder %s17, 7
    %p267 = por %p265, %p266
    %p268 = scmp.ne.s32.totalorder %s260, %s263
    %p269 = scmp.eq.s32.totalorder %s17, 0
    %p270 = por %p268, %p269
    %p271 = scmp.ne.s32.totalorder %s260, %s263
    %p272 = scmp.eq.s32.totalorder %s22, 7
    %p273 = por %p271, %p272
    %p274 = scmp.ne.s32.totalorder %s263, %s264
    %p275 = scmp.eq.s32.totalorder %s22, 0
    %p276 = por %p274, %p275
    %p277 = scmp.ne.s32.totalorder %s263, %s264
    %p278 = scmp.eq.s32.totalorder %s23, 7
    %p279 = por %p277, %p278
    %p281 = scmp.ne.s32.totalorder %s264, %s280
    %p282 = scmp.eq.s32.totalorder %s23, 0
    %p283 = por %p281, %p282
    %p284 = scmp.le.s32.totalorder 1, %s17
    %p285 = scmp.lt.s32.totalorder %s17, 9
    %p286 = pnand %p284, %p285
    %p287 = pneg %p286
    // Predicated region
    $region9: #{attention_forward.4} parent=5 // pred_check
      _
    $region10: #{attention_forward.4} parent=5 // pred_check_branch
      %289 = sbr.rel (%p286) target = $region12
    $region11: #{attention_forward.4} parent=5 // pred_region
      %s290 = ssub.s32 %s17, 1
      // Predicated region
      $region13: #{attention_forward.4} parent=11 // pred_check
        %p291 = pneg %p160
      $region14: #{attention_forward.4} parent=11 // pred_check_branch
        %293 = sbr.rel (%p291) target = $region16
      $region15: #{attention_forward.4} parent=11 // pred_region
        %s294 = sld [smem:[#allocation7 + %s29]]
        %p295 = scmp.lt.s32.totalorder %s294, 0
        %s296 = scalar_select %p295, %s294, 0
        %s297 = smul.addr %s296, 4
        %s298 = scalar_lea.vmem %s5, %s297
        %s299 = sld [smem:[#allocation7 + %s29]]
      $region16: #{attention_forward.4} parent=11 // pred_fallthru
        _
      // Predicated region
      $region17: #{attention_forward.4} parent=11 // pred_check
        %p300 = pneg %p188
      $region18: #{attention_forward.4} parent=11 // pred_check_branch
        %302 = sbr.rel (%p300) target = $region20
      $region19: #{attention_forward.4} parent=11 // pred_region
        %s303 = sld [smem:[#allocation7 + %s29]]
        %p304 = scmp.lt.s32.totalorder %s303, 0
        %s305 = scalar_select %p304, %s303, 0
        %s306 = smul.addr %s305, 4
        %s307 = scalar_lea.vmem %s6, %s306
        %s308 = sld [smem:[#allocation7 + %s29]]
      $region20: #{attention_forward.4} parent=11 // pred_fallthru
        _
      // Predicated region
      $region21: #{attention_forward.4} parent=11 // pred_check
        %p309 = pneg %p216
      $region22: #{attention_forward.4} parent=11 // pred_check_branch
        %311 = sbr.rel (%p309) target = $region24
      $region23: #{attention_forward.4} parent=11 // pred_region
        %s312 = sld [smem:[#allocation8 + %s29]]
        %p313 = scmp.lt.s32.totalorder %s312, 0
        %s314 = scalar_select %p313, %s312, 0
        %s315 = smul.addr %s314, 4
        %s316 = scalar_lea.vmem %s7, %s315
        %s317 = sld [smem:[#allocation8 + %s29]]
      $region24: #{attention_forward.4} parent=11 // pred_fallthru
        _
      // Predicated region
      $region25: #{attention_forward.4} parent=11 // pred_check
        %p318 = pneg %p244
      $region26: #{attention_forward.4} parent=11 // pred_check_branch
        %320 = sbr.rel (%p318) target = $region28
      $region27: #{attention_forward.4} parent=11 // pred_region
        %s321 = sld [smem:[#allocation8 + %s29]]
        %p322 = scmp.lt.s32.totalorder %s321, 0
        %s323 = scalar_select %p322, %s321, 0
        %s324 = smul.addr %s323, 4
        %s325 = scalar_lea.vmem %s8, %s324
        %s326 = sld [smem:[#allocation8 + %s29]]
      $region28: #{attention_forward.4} parent=11 // pred_fallthru
        _
    $region12: #{attention_forward.4} parent=5 // pred_fallthru
      _
    %p327 = scmp.lt.s32.totalorder %s17, 8
    // Predicated region
    $region29: #{attention_forward.4} parent=5 // pred_check
      %p328 = pneg %p327
    $region30: #{attention_forward.4} parent=5 // pred_check_branch
      %330 = sbr.rel (%p328) target = $region32
    $region31: #{attention_forward.4} parent=5 // pred_region
      // Predicated region
      $region33: #{attention_forward.4} parent=31 // pred_check
        %p331 = pneg %p62
      $region34: #{attention_forward.4} parent=31 // pred_check_branch
        %333 = sbr.rel (%p331) target = $region36
      $region35: #{attention_forward.4} parent=31 // pred_region
        %s334 = sld [smem:[#allocation7 + %s26]]
        %p335 = scmp.lt.s32.totalorder %s24, 1
        %s336 = scalar_select %p335, %s24, 1
        %p337 = scmp.lt.s32.totalorder %s25, 3
        %s338 = scalar_select %p337, %s25, 3
        %p339 = scmp.lt.s32.totalorder %s334, 0
        %s340 = scalar_select %p339, %s334, 0
        %s341 = sadd.s32 %s340, %s338
        %s342 = smul.addr %s336, 4
        %s343 = sadd.s32 %s341, %s342
        %s344 = smul.addr %s343, 4
        %s345 = scalar_lea.vmem %s2, %s344
        %s346 = sld [smem:[#allocation7 + %s26]]
      $region36: #{attention_forward.4} parent=31 // pred_fallthru
        _
      // Predicated region
      $region37: #{attention_forward.4} parent=31 // pred_check
        %p347 = pneg %p94
      $region38: #{attention_forward.4} parent=31 // pred_check_branch
        %349 = sbr.rel (%p347) target = $region40
      $region39: #{attention_forward.4} parent=31 // pred_region
        %s350 = sld [smem:[#allocation8 + %s26]]
        %p351 = scmp.lt.s32.totalorder %s24, 1
        %s352 = scalar_select %p351, %s24, 1
        %p353 = scmp.lt.s32.totalorder %s25, 3
        %s354 = scalar_select %p353, %s25, 3
        %p355 = scmp.lt.s32.totalorder %s350, 0
        %s356 = scalar_select %p355, %s350, 0
        %s357 = sadd.s32 %s356, %s354
        %s358 = smul.addr %s352, 4
        %s359 = sadd.s32 %s357, %s358
        %s360 = sadd.s32 %s359, 8
        %s361 = smul.addr %s360, 4
        %s362 = scalar_lea.vmem %s3, %s361
        %s363 = sld [smem:[#allocation8 + %s26]]
      $region40: #{attention_forward.4} parent=31 // pred_fallthru
        _
      // Predicated region
      $region41: #{attention_forward.4} parent=31 // pred_check
        %p364 = pneg %p126
      $region42: #{attention_forward.4} parent=31 // pred_check_branch
        %366 = sbr.rel (%p364) target = $region44
      $region43: #{attention_forward.4} parent=31 // pred_region
        %s367 = sld [smem:[#allocation8 + %s26]]
        %p368 = scmp.lt.s32.totalorder %s24, 1
        %s369 = scalar_select %p368, %s24, 1
        %p370 = scmp.lt.s32.totalorder %s25, 3
        %s371 = scalar_select %p370, %s25, 3
        %p372 = scmp.lt.s32.totalorder %s367, 0
        %s373 = scalar_select %p372, %s367, 0
        %s374 = sadd.s32 %s373, %s371
        %s375 = smul.addr %s369, 4
        %s376 = sadd.s32 %s374, %s375
        %s377 = sadd.s32 %s376, 16
        %s378 = smul.addr %s377, 4
        %s379 = scalar_lea.vmem %s4, %s378
        %s380 = sld [smem:[#allocation8 + %s26]]
      $region44: #{attention_forward.4} parent=31 // pred_fallthru
        _
    $region32: #{attention_forward.4} parent=5 // pred_fallthru
      _
    %p381 = scmp.le.s32.totalorder 1, %s17
    %p382 = scmp.lt.s32.totalorder %s17, 9
    %p383 = pnand %p381, %p382
    %p384 = pneg %p383
    // Predicated region
    $region45: #{attention_forward.4} parent=5 // pred_check
      _
    $region46: #{attention_forward.4} parent=5 // pred_check_branch
      %386 = sbr.rel (%p383) target = $region48
    $region47: #{attention_forward.4} parent=5 // pred_region
      %s387 = ssub.s32 %s17, 1
      %s388 = sld [smem:[#allocation7 + %s29]]
      %p389 = scmp.lt.s32.totalorder %s27, 1
      %s390 = scalar_select %p389, %s27, 1
      %p391 = scmp.lt.s32.totalorder %s28, 3
      %s392 = scalar_select %p391, %s28, 3
      %p393 = scmp.lt.s32.totalorder %s388, 0
      %s394 = scalar_select %p393, %s388, 0
      %s395 = sadd.s32 %s394, %s392
      %s396 = smul.addr %s390, 4
      %s397 = sadd.s32 %s395, %s396
      %s398 = smul.addr %s397, 4
      %s399 = scalar_lea.vmem %s2, %s398
      %p400 = pneg %p68
      %p401 = pneg %p65
      %s402 = sld [smem:[#allocation8 + %s29]]
      %p403 = scmp.lt.s32.totalorder %s27, 1
      %s404 = scalar_select %p403, %s27, 1
      %p405 = scmp.lt.s32.totalorder %s28, 3
      %s406 = scalar_select %p405, %s28, 3
      %p407 = scmp.lt.s32.totalorder %s402, 0
      %s408 = scalar_select %p407, %s402, 0
      %s409 = sadd.s32 %s408, %s406
      %s410 = smul.addr %s404, 4
      %s411 = sadd.s32 %s409, %s410
      %s412 = sadd.s32 %s411, 8
      %s413 = smul.addr %s412, 4
      %s414 = scalar_lea.vmem %s3, %s413
      %p415 = pneg %p100
      %p416 = pneg %p97
      %s417 = sld [smem:[#allocation8 + %s29]]
      %p418 = scmp.lt.s32.totalorder %s27, 1
      %s419 = scalar_select %p418, %s27, 1
      %p420 = scmp.lt.s32.totalorder %s28, 3
      %s421 = scalar_select %p420, %s28, 3
      %p422 = scmp.lt.s32.totalorder %s417, 0
      %s423 = scalar_select %p422, %s417, 0
      %s424 = sadd.s32 %s423, %s421
      %s425 = smul.addr %s419, 4
      %s426 = sadd.s32 %s424, %s425
      %s427 = sadd.s32 %s426, 16
      %s428 = smul.addr %s427, 4
      %s429 = scalar_lea.vmem %s4, %s428
      %p430 = pneg %p132
      %p431 = pneg %p129
      %s432 = sld [smem:[#allocation7 + %s29]]
      %p433 = scmp.lt.s32.totalorder %s432, 0
      %s434 = scalar_select %p433, %s432, 0
      %s435 = smul.addr %s434, 4
      %s436 = scalar_lea.vmem %s5, %s435
      %p437 = pneg %p160
      %p438 = pneg %p157
      %s439 = sld [smem:[#allocation7 + %s29]]
      %p440 = scmp.lt.s32.totalorder %s439, 0
      %s441 = scalar_select %p440, %s439, 0
      %s442 = smul.addr %s441, 4
      %s443 = scalar_lea.vmem %s6, %s442
      %p444 = pneg %p188
      %p445 = pneg %p185
      %s446 = sld [smem:[#allocation8 + %s29]]
      %p447 = scmp.lt.s32.totalorder %s446, 0
      %s448 = scalar_select %p447, %s446, 0
      %s449 = smul.addr %s448, 4
      %s450 = scalar_lea.vmem %s7, %s449
      %p451 = pneg %p216
      %p452 = pneg %p213
      %s453 = sld [smem:[#allocation8 + %s29]]
      %p454 = scmp.lt.s32.totalorder %s453, 0
      %s455 = scalar_select %p454, %s453, 0
      %s456 = smul.addr %s455, 4
      %s457 = scalar_lea.vmem %s8, %s456
      %p458 = pneg %p244
      %p459 = pneg %p241
      %p460 = pneg %p276
      %p461 = pneg %p273
      %s462 = sld [smem:[#allocation7 + %s29]]
      %p463 = scmp.lt.s32.totalorder %s27, 1
      %s464 = scalar_select %p463, %s27, 1
      %p465 = scmp.lt.s32.totalorder %s28, 3
      %s466 = scalar_select %p465, %s28, 3
      %p467 = scmp.lt.s32.totalorder %s462, 0
      %s468 = scalar_select %p467, %s462, 0
      %s469 = sadd.s32 %s468, %s466
      %s470 = smul.addr %s464, 4
      %s471 = sadd.s32 %s469, %s470
      %s472 = smul.addr %s471, 4
      %s473 = scalar_lea.vmem %s9, %s472
      %s474 = sld [smem:[#allocation7 + %s29]]
      %p475 = scmp.lt.s32.totalorder %s27, 1
      %s476 = scalar_select %p475, %s27, 1
      %p477 = scmp.lt.s32.totalorder %s28, 3
      %s478 = scalar_select %p477, %s28, 3
      %p479 = scmp.lt.s32.totalorder %s474, 0
      %s480 = scalar_select %p479, %s474, 0
      %s481 = sadd.s32 %s480, %s478
      %s482 = smul.addr %s476, 4
      %s483 = sadd.s32 %s481, %s482
      %s484 = smul.addr %s483, 4
      %s485 = scalar_lea.vmem %s2, %s484
      %s486 = sld [smem:[#allocation7 + %s29]]
      %s487 = sld [smem:[#allocation8 + %s29]]
      %p488 = scmp.lt.s32.totalorder %s27, 1
      %s489 = scalar_select %p488, %s27, 1
      %p490 = scmp.lt.s32.totalorder %s28, 3
      %s491 = scalar_select %p490, %s28, 3
      %p492 = scmp.lt.s32.totalorder %s487, 0
      %s493 = scalar_select %p492, %s487, 0
      %s494 = sadd.s32 %s493, %s491
      %s495 = smul.addr %s489, 4
      %s496 = sadd.s32 %s494, %s495
      %s497 = sadd.s32 %s496, 8
      %s498 = smul.addr %s497, 4
      %s499 = scalar_lea.vmem %s3, %s498
      %s500 = sld [smem:[#allocation8 + %s29]]
      %s501 = sld [smem:[#allocation8 + %s29]]
      %p502 = scmp.lt.s32.totalorder %s27, 1
      %s503 = scalar_select %p502, %s27, 1
      %p504 = scmp.lt.s32.totalorder %s28, 3
      %s505 = scalar_select %p504, %s28, 3
      %p506 = scmp.lt.s32.totalorder %s501, 0
      %s507 = scalar_select %p506, %s501, 0
      %s508 = sadd.s32 %s507, %s505
      %s509 = smul.addr %s503, 4
      %s510 = sadd.s32 %s508, %s509
      %s511 = sadd.s32 %s510, 16
      %s512 = smul.addr %s511, 4
      %s513 = scalar_lea.vmem %s4, %s512
      %s514 = sld [smem:[#allocation8 + %s29]]
      %s515 = sld [smem:[#allocation7 + %s29]]
      %p516 = scmp.lt.s32.totalorder %s515, 0
      %s517 = scalar_select %p516, %s515, 0
      %s518 = smul.addr %s517, 4
      %s519 = scalar_lea.vmem %s5, %s518
      %s520 = sld [smem:[#allocation7 + %s29]]
      %s521 = sld [smem:[#allocation7 + %s29]]
      %p522 = scmp.lt.s32.totalorder %s521, 0
      %s523 = scalar_select %p522, %s521, 0
      %s524 = smul.addr %s523, 4
      %s525 = scalar_lea.vmem %s6, %s524
      %s526 = sld [smem:[#allocation7 + %s29]]
      %s527 = sld [smem:[#allocation8 + %s29]]
      %p528 = scmp.lt.s32.totalorder %s527, 0
      %s529 = scalar_select %p528, %s527, 0
      %s530 = smul.addr %s529, 4
      %s531 = scalar_lea.vmem %s7, %s530
      %s532 = sld [smem:[#allocation8 + %s29]]
      %s533 = sld [smem:[#allocation8 + %s29]]
      %p534 = scmp.lt.s32.totalorder %s533, 0
      %s535 = scalar_select %p534, %s533, 0
      %s536 = smul.addr %s535, 4
      %s537 = scalar_lea.vmem %s8, %s536
      %s538 = sld [smem:[#allocation8 + %s29]]
      %s539 = sld [smem:[#allocation7 + %s29]]
      %p540 = scmp.lt.s32.totalorder %s27, 1
      %s541 = scalar_select %p540, %s27, 1
      %p542 = scmp.lt.s32.totalorder %s28, 3
      %s543 = scalar_select %p542, %s28, 3
      %p544 = scmp.lt.s32.totalorder %s539, 0
      %s545 = scalar_select %p544, %s539, 0
      %s546 = sadd.s32 %s545, %s543
      %s547 = smul.addr %s541, 4
      %s548 = sadd.s32 %s546, %s547
      %s549 = smul.addr %s548, 4
      %s550 = scalar_lea.vmem %s9, %s549
      %s551 = sld [smem:[#allocation7 + %s29]]
      %s553 = sld [smem:[#allocation7 + %s29]]
      %s554 = sld [smem:[#allocation8 + %s29]]
      %p555 = scmp.eq.s32.totalorder %s554, 0
      // Predicated region
      $region49: #{attention_forward.4} parent=47 // pred_check
        %p556 = pneg %p555
      $region50: #{attention_forward.4} parent=47 // pred_check_branch
        %558 = sbr.rel (%p556) target = $region52
      $region51: #{attention_forward.4} parent=47 // pred_region
        %v559 = vld [vmem:[%s485] sm:$0xf]
        %v560 = vunpack.c.l.bf16 %v559
        %v561 = vld [vmem:[%s519] sm:$0xf]
        %v562 = vunpack.c.l.bf16 %v561
        %v563 = vld [vmem:[%s525] sm:$0xf]
        %v564 = vunpack.c.l.bf16 %v563
        %566 = vrot.lane.b32.xlu0 %v560, 124
        %v567 = vpop.permute.xlu0 %566
        %569 = vrot.lane.b32.xlu0 %v560, 4
        %v570 = vpop.permute.xlu0 %569
        %vm572 = vcmask 31744
        %v573 = vsel %vm572, %v567, %v570
        %v574 = vmul.f32 %v560, %v562
        %v575 = vmul.f32 %v573, %v564
        %v576 = vadd.f32 %v574, %v575
        %v577 = vpack.c.bf16 %v576, %v576
        %vm578 = vcmask 60416
        %579 = vst.msk [vmem:[#allocation2] sm:$0xf] %vm578, %v577
        %vm580 = vcmask 7168
        %581 = vst.msk [vmem:[#allocation3] sm:$0xff] %vm580, -1e+30
        %582 = vst.msk [vmem:[#allocation4] sm:$0xff] %vm580, 0.0
        %vm583 = vcmask 64512
        %584 = vst.msk [vmem:[#allocation5] sm:$0xff] %vm583, 0.0
      $region52: #{attention_forward.4} parent=47 // pred_fallthru
        _
      %p585 = scmp.lt.s32.totalorder %s554, %s553
      // Predicated region
      $region53: #{attention_forward.4} parent=47 // pred_check
        %p586 = pneg %p585
      $region54: #{attention_forward.4} parent=47 // pred_check_branch
        %588 = sbr.rel (%p586) target = $region56
      $region55: #{attention_forward.4} parent=47 // pred_region
        %v589 = vld [vmem:[%s499] sm:$0xf]
        %v590 = vunpack.c.l.bf16 %v589
        %v591 = vld [vmem:[%s531] sm:$0xf]
        %v592 = vunpack.c.l.bf16 %v591
        %v593 = vld [vmem:[%s537] sm:$0xf]
        %v594 = vunpack.c.l.bf16 %v593
        %596 = vrot.lane.b32.xlu0 %v590, 124
        %v597 = vpop.permute.xlu0 %596
        %599 = vrot.lane.b32.xlu0 %v590, 4
        %v600 = vpop.permute.xlu0 %599
        %vm602 = vcmask 31744
        %v603 = vsel %vm602, %v597, %v600
        %v604 = vmul.f32 %v590, %v592
        %v605 = vmul.f32 %v603, %v594
        %v606 = vadd.f32 %v604, %v605
        %v607 = vld [vmem:[#allocation2] sm:$0xf]
        %v608 = vpack.c.bf16 %v606, %v606
        %vm609 = vcmask 64512
        %v611 = vsel %vm609, %v607, 0
        %v614 = vsel %vm609, %v608, 0
        %616 = vmatprep.subr.bf16.mxu0 0
        %617 = vmatpush1.bf16.xpose.msra.mxu0 %v614
        %618 = vmatprep.subr.bf16.mxu0 0
        %619 = vmatpush1.bf16.xpose.msra.mxu0 0
        %620 = vmatprep.subr.bf16.mxu0 0
        %621 = vmatpush1.bf16.xpose.msra.mxu0 0
        %622 = vmatprep.subr.bf16.mxu0 0
        %623 = vmatpush1.bf16.xpose.msra.mxu0 0
        %624 = vmatprep.subr.bf16.mxu0 0
        %625 = vmatpush1.bf16.xpose.msra.mxu0 0
        %626 = vmatprep.subr.bf16.mxu0 0
        %627 = vmatpush1.bf16.xpose.msra.mxu0 0
        %628 = vmatprep.subr.bf16.mxu0 0
        %629 = vmatpush1.bf16.xpose.msra.mxu0 0
        %630 = vmatprep.subr.bf16.mxu0 0
        %631 = vmatpush1.bf16.xpose.msra.mxu0 0
        %632 = vmatprep.subr.bf16.mxu0 0
        %633 = vmatpush1.bf16.xpose.msra.mxu0 0
        %634 = vmatprep.subr.bf16.mxu0 0
        %635 = vmatpush1.bf16.xpose.msra.mxu0 0
        %636 = vmatprep.subr.bf16.mxu0 0
        %637 = vmatpush1.bf16.xpose.msra.mxu0 0
        %638 = vmatprep.subr.bf16.mxu0 0
        %639 = vmatpush1.bf16.xpose.msra.mxu0 0
        %640 = vmatprep.subr.bf16.mxu0 0
        %641 = vmatpush1.bf16.xpose.msra.mxu0 0
        %642 = vmatprep.subr.bf16.mxu0 0
        %643 = vmatpush1.bf16.xpose.msra.mxu0 0
        %644 = vmatprep.subr.bf16.mxu0 0
        %645 = vmatpush1.bf16.xpose.msra.mxu0 0
        %646 = vmatprep.subr.bf16.mxu0 0
        %647 = vmatpush1.bf16.xpose.msra.mxu0 0
        %648 = vmatprep.mubr.bf16.mxu0 0
        %649 = vmatmul.mubr.bf16.gmra.mrb[0].mxu0 %v611
        %v650 = vpop.f32.mrb[0].mxu0
        %v651 = vadd.f32 0.0, %v650
        %v652 = vpop.f32.mrb[0].mxu0
        %v653 = vpop.f32.mrb[0].mxu0
        %v654 = vpop.f32.mrb[0].mxu0
        %655 = vdwg.mxu0
        %v656 = vld [vmem:[#allocation3] sm:$0xff]
        %v657 = vsel %vm609, %v651, -inf
        %658 = vmax.xlane.f32.xlu0 %v657
        %v659 = vpop.xlane.xlu0 %658
        %v660 = vmax.f32 %v656, %v659
        %v661 = vsub.f32 %v656, %v660
        %v662 = vmul.f32 %v661, 1.442695
        %v663 = vpow.pop %v662
        %665 = vset.pattern.permute.xlu0 0
        %666 = vperm.xlu0 %665, %v660
        %v667 = vpop.permute.xlu0 %666
        %v669 = vsub.f32 %v651, %v667
        %v670 = vmul.f32 %v669, 1.442695
        %v671 = vpow.pop %v670
        %v672 = vld [vmem:[#allocation4] sm:$0xff]
        %v673 = vmul.f32 %v663, %v672
        %v674 = vsel %vm609, %v671, 0.0
        %675 = vadd.xlane.f32.xlu0 %v674
        %v676 = vpop.xlane.xlu0 %675
        %v677 = vadd.f32 %v673, %v676
        %vm678 = vcmask 7168
        %679 = vst.msk [vmem:[#allocation4] sm:$0xff] %vm678, %v677
        %v680 = vld [vmem:[#allocation5] sm:$0xff]
        %682 = vset.pattern.permute.xlu0 0
        %683 = vperm.xlu0 %682, %v663
        %v684 = vpop.permute.xlu0 %683
        %v686 = vmul.f32 %v684, %v680
        %v687 = vpack.c.bf16 %v671, %v671
        %v688 = vld [vmem:[%s513] sm:$0xf]
        %v690 = vsel %vm609, %v687, 0
        %vm692 = vcmask 1043456
        %v694 = vsel %vm692, %v688, 0
        %696 = vmatprep.subr.bf16.mxu0 0
        %697 = vmatpush1.bf16.msra.mxu0 %v694
        %698 = vmatprep.subr.bf16.mxu0 0
        %699 = vmatpush1.bf16.msra.mxu0 0
        %700 = vmatprep.subr.bf16.mxu0 0
        %701 = vmatpush1.bf16.msra.mxu0 0
        %702 = vmatprep.subr.bf16.mxu0 0
        %703 = vmatpush1.bf16.msra.mxu0 0
        %704 = vmatprep.subr.bf16.mxu0 0
        %705 = vmatpush1.bf16.msra.mxu0 0
        %706 = vmatprep.subr.bf16.mxu0 0
        %707 = vmatpush1.bf16.msra.mxu0 0
        %708 = vmatprep.subr.bf16.mxu0 0
        %709 = vmatpush1.bf16.msra.mxu0 0
        %710 = vmatprep.subr.bf16.mxu0 0
        %711 = vmatpush1.bf16.msra.mxu0 0
        %712 = vmatprep.subr.bf16.mxu0 0
        %713 = vmatpush1.bf16.msra.mxu0 0
        %714 = vmatprep.subr.bf16.mxu0 0
        %715 = vmatpush1.bf16.msra.mxu0 0
        %716 = vmatprep.subr.bf16.mxu0 0
        %717 = vmatpush1.bf16.msra.mxu0 0
        %718 = vmatprep.subr.bf16.mxu0 0
        %719 = vmatpush1.bf16.msra.mxu0 0
        %720 = vmatprep.subr.bf16.mxu0 0
        %721 = vmatpush1.bf16.msra.mxu0 0
        %722 = vmatprep.subr.bf16.mxu0 0
        %723 = vmatpush1.bf16.msra.mxu0 0
        %724 = vmatprep.subr.bf16.mxu0 0
        %725 = vmatpush1.bf16.msra.mxu0 0
        %726 = vmatprep.subr.bf16.mxu0 0
        %727 = vmatpush1.bf16.msra.mxu0 0
        %728 = vmatprep.mubr.bf16.mxu0 0
        %729 = vmatmul.mubr.bf16.gmra.mrb[0].mxu0 %v690
        %v730 = vpop.f32.mrb[0].mxu0
        %v731 = vadd.f32 0.0, %v730
        %v732 = vpop.f32.mrb[0].mxu0
        %v733 = vpop.f32.mrb[0].mxu0
        %v734 = vpop.f32.mrb[0].mxu0
        %735 = vdwg.mxu0
        %v736 = vadd.f32 %v686, %v731
        %737 = vst.msk [vmem:[#allocation5] sm:$0xff] %vm609, %v736
        %738 = vst.msk [vmem:[#allocation3] sm:$0xff] %vm678, %v660
      $region56: #{attention_forward.4} parent=47 // pred_fallthru
        _
      %p739 = scmp.eq.s32.totalorder %s554, %s553
      // Predicated region
      $region57: #{attention_forward.4} parent=47 // pred_check
        %p740 = pneg %p739
      $region58: #{attention_forward.4} parent=47 // pred_check_branch
        %742 = sbr.rel (%p740) target = $region60
      $region59: #{attention_forward.4} parent=47 // pred_region
        %v743 = vld [vmem:[%s499] sm:$0xf]
        %v744 = vunpack.c.l.bf16 %v743
        %v745 = vld [vmem:[%s531] sm:$0xf]
        %v746 = vunpack.c.l.bf16 %v745
        %v747 = vld [vmem:[%s537] sm:$0xf]
        %v748 = vunpack.c.l.bf16 %v747
        %750 = vrot.lane.b32.xlu0 %v744, 124
        %v751 = vpop.permute.xlu0 %750
        %753 = vrot.lane.b32.xlu0 %v744, 4
        %v754 = vpop.permute.xlu0 %753
        %vm756 = vcmask 31744
        %v757 = vsel %vm756, %v751, %v754
        %v758 = vmul.f32 %v744, %v746
        %v759 = vmul.f32 %v757, %v748
        %v760 = vadd.f32 %v758, %v759
        %v761 = vld [vmem:[#allocation2] sm:$0xf]
        %v762 = vpack.c.bf16 %v760, %v760
        %vm763 = vcmask 64512
        %v765 = vsel %vm763, %v761, 0
        %v768 = vsel %vm763, %v762, 0
        %770 = vmatprep.subr.bf16.mxu0 0
        %771 = vmatpush1.bf16.xpose.msra.mxu0 %v768
        %772 = vmatprep.subr.bf16.mxu0 0
        %773 = vmatpush1.bf16.xpose.msra.mxu0 0
        %774 = vmatprep.subr.bf16.mxu0 0
        %775 = vmatpush1.bf16.xpose.msra.mxu0 0
        %776 = vmatprep.subr.bf16.mxu0 0
        %777 = vmatpush1.bf16.xpose.msra.mxu0 0
        %778 = vmatprep.subr.bf16.mxu0 0
        %779 = vmatpush1.bf16.xpose.msra.mxu0 0
        %780 = vmatprep.subr.bf16.mxu0 0
        %781 = vmatpush1.bf16.xpose.msra.mxu0 0
        %782 = vmatprep.subr.bf16.mxu0 0
        %783 = vmatpush1.bf16.xpose.msra.mxu0 0
        %784 = vmatprep.subr.bf16.mxu0 0
        %785 = vmatpush1.bf16.xpose.msra.mxu0 0
        %786 = vmatprep.subr.bf16.mxu0 0
        %787 = vmatpush1.bf16.xpose.msra.mxu0 0
        %788 = vmatprep.subr.bf16.mxu0 0
        %789 = vmatpush1.bf16.xpose.msra.mxu0 0
        %790 = vmatprep.subr.bf16.mxu0 0
        %791 = vmatpush1.bf16.xpose.msra.mxu0 0
        %792 = vmatprep.subr.bf16.mxu0 0
        %793 = vmatpush1.bf16.xpose.msra.mxu0 0
        %794 = vmatprep.subr.bf16.mxu0 0
        %795 = vmatpush1.bf16.xpose.msra.mxu0 0
        %796 = vmatprep.subr.bf16.mxu0 0
        %797 = vmatpush1.bf16.xpose.msra.mxu0 0
        %798 = vmatprep.subr.bf16.mxu0 0
        %799 = vmatpush1.bf16.xpose.msra.mxu0 0
        %800 = vmatprep.subr.bf16.mxu0 0
        %801 = vmatpush1.bf16.xpose.msra.mxu0 0
        %802 = vmatprep.mubr.bf16.mxu0 0
        %803 = vmatmul.mubr.bf16.gmra.mrb[0].mxu0 %v765
        %v804 = vpop.f32.mrb[0].mxu0
        %v805 = vadd.f32 0.0, %v804
        %v806 = vpop.f32.mrb[0].mxu0
        %v807 = vpop.f32.mrb[0].mxu0
        %v808 = vpop.f32.mrb[0].mxu0
        %809 = vdwg.mxu0
        %v810 = vlaneseq
        %v811 = vshrl.u32 %v810, 7
        %v812 = vlaneseq
        %v813 = vand.u32 %v812, 127
        %vm814 = vcmp.le.s32.totalorder %v813, %v811
        %v815 = vsel %vm814, %v805, -1e+30
        %v816 = vld [vmem:[#allocation3] sm:$0xff]
        %v817 = vsel %vm763, %v815, -inf
        %818 = vmax.xlane.f32.xlu0 %v817
        %v819 = vpop.xlane.xlu0 %818
        %v820 = vmax.f32 %v816, %v819
        %v821 = vsub.f32 %v816, %v820
        %v822 = vmul.f32 %v821, 1.442695
        %v823 = vpow.pop %v822
        %825 = vset.pattern.permute.xlu0 0
        %826 = vperm.xlu0 %825, %v820
        %v827 = vpop.permute.xlu0 %826
        %v829 = vsub.f32 %v815, %v827
        %v830 = vmul.f32 %v829, 1.442695
        %v831 = vpow.pop %v830
        %v832 = vld [vmem:[#allocation4] sm:$0xff]
        %v833 = vmul.f32 %v823, %v832
        %v834 = vsel %vm763, %v831, 0.0
        %835 = vadd.xlane.f32.xlu0 %v834
        %v836 = vpop.xlane.xlu0 %835
        %v837 = vadd.f32 %v833, %v836
        %vm838 = vcmask 7168
        %839 = vst.msk [vmem:[#allocation4] sm:$0xff] %vm838, %v837
        %v840 = vld [vmem:[#allocation5] sm:$0xff]
        %842 = vset.pattern.permute.xlu0 0
        %843 = vperm.xlu0 %842, %v823
        %v844 = vpop.permute.xlu0 %843
        %v846 = vmul.f32 %v844, %v840
        %v847 = vpack.c.bf16 %v831, %v831
        %v848 = vld [vmem:[%s513] sm:$0xf]
        %v850 = vsel %vm763, %v847, 0
        %vm852 = vcmask 1043456
        %v854 = vsel %vm852, %v848, 0
        %856 = vmatprep.subr.bf16.mxu0 0
        %857 = vmatpush1.bf16.msra.mxu0 %v854
        %858 = vmatprep.subr.bf16.mxu0 0
        %859 = vmatpush1.bf16.msra.mxu0 0
        %860 = vmatprep.subr.bf16.mxu0 0
        %861 = vmatpush1.bf16.msra.mxu0 0
        %862 = vmatprep.subr.bf16.mxu0 0
        %863 = vmatpush1.bf16.msra.mxu0 0
        %864 = vmatprep.subr.bf16.mxu0 0
        %865 = vmatpush1.bf16.msra.mxu0 0
        %866 = vmatprep.subr.bf16.mxu0 0
        %867 = vmatpush1.bf16.msra.mxu0 0
        %868 = vmatprep.subr.bf16.mxu0 0
        %869 = vmatpush1.bf16.msra.mxu0 0
        %870 = vmatprep.subr.bf16.mxu0 0
        %871 = vmatpush1.bf16.msra.mxu0 0
        %872 = vmatprep.subr.bf16.mxu0 0
        %873 = vmatpush1.bf16.msra.mxu0 0
        %874 = vmatprep.subr.bf16.mxu0 0
        %875 = vmatpush1.bf16.msra.mxu0 0
        %876 = vmatprep.subr.bf16.mxu0 0
        %877 = vmatpush1.bf16.msra.mxu0 0
        %878 = vmatprep.subr.bf16.mxu0 0
        %879 = vmatpush1.bf16.msra.mxu0 0
        %880 = vmatprep.subr.bf16.mxu0 0
        %881 = vmatpush1.bf16.msra.mxu0 0
        %882 = vmatprep.subr.bf16.mxu0 0
        %883 = vmatpush1.bf16.msra.mxu0 0
        %884 = vmatprep.subr.bf16.mxu0 0
        %885 = vmatpush1.bf16.msra.mxu0 0
        %886 = vmatprep.subr.bf16.mxu0 0
        %887 = vmatpush1.bf16.msra.mxu0 0
        %888 = vmatprep.mubr.bf16.mxu0 0
        %889 = vmatmul.mubr.bf16.gmra.mrb[0].mxu0 %v850
        %v890 = vpop.f32.mrb[0].mxu0
        %v891 = vadd.f32 0.0, %v890
        %v892 = vpop.f32.mrb[0].mxu0
        %v893 = vpop.f32.mrb[0].mxu0
        %v894 = vpop.f32.mrb[0].mxu0
        %895 = vdwg.mxu0
        %v896 = vadd.f32 %v846, %v891
        %897 = vst.msk [vmem:[#allocation5] sm:$0xff] %vm763, %v896
        %898 = vst.msk [vmem:[#allocation3] sm:$0xff] %vm838, %v820
        %v899 = vld [vmem:[#allocation4] sm:$0xff]
        %v900 = vrcp.pop %v899
        %v901 = vld [vmem:[#allocation5] sm:$0xff]
        %903 = vset.pattern.permute.xlu0 0
        %904 = vperm.xlu0 %903, %v900
        %v905 = vpop.permute.xlu0 %904
        %v907 = vmul.f32 %v901, %v905
        %v908 = vpack.c.bf16 %v907, %v907
        %vm909 = vcmask 60416
        %910 = vst.msk [vmem:[%s550] sm:$0xf] %vm909, %v908
      $region60: #{attention_forward.4} parent=47 // pred_fallthru
        _
      %s911 = sld [smem:[#allocation7 + %s29]]
      %p912 = scmp.lt.s32.totalorder %s27, 1
      %s913 = scalar_select %p912, %s27, 1
      %p914 = scmp.lt.s32.totalorder %s28, 3
      %s915 = scalar_select %p914, %s28, 3
      %p916 = scmp.lt.s32.totalorder %s911, 0
      %s917 = scalar_select %p916, %s911, 0
      %s918 = sadd.s32 %s917, %s915
      %s919 = smul.addr %s913, 4
      %s920 = sadd.s32 %s918, %s919
      %s921 = smul.addr %s920, 4
      %s922 = scalar_lea.vmem %s9, %s921
      // Predicated region
      $region61: #{attention_forward.4} parent=47 // pred_check
        %p923 = pneg %p273
      $region62: #{attention_forward.4} parent=47 // pred_check_branch
        %925 = sbr.rel (%p923) target = $region64
      $region63: #{attention_forward.4} parent=47 // pred_region
        %s926 = sld [smem:[#allocation7 + %s29]]
      $region64: #{attention_forward.4} parent=47 // pred_fallthru
        _
    $region48: #{attention_forward.4} parent=5 // pred_fallthru
      _
    %p927 = scmp.le.s32.totalorder 2, %s17
    // Predicated region
    $region65: #{attention_forward.4} parent=5 // pred_check
      %p928 = pneg %p927
    $region66: #{attention_forward.4} parent=5 // pred_check_branch
      %930 = sbr.rel (%p928) target = $region68
    $region67: #{attention_forward.4} parent=5 // pred_region
      %s931 = ssub.s32 %s17, 2
      // Predicated region
      $region69: #{attention_forward.4} parent=67 // pred_check
        %p932 = pneg %p279
      $region70: #{attention_forward.4} parent=67 // pred_check_branch
        %934 = sbr.rel (%p932) target = $region72
      $region71: #{attention_forward.4} parent=67 // pred_region
        %s935 = sld [smem:[#allocation7 + %s32]]
        %p936 = scmp.lt.s32.totalorder %s30, 1
        %s937 = scalar_select %p936, %s30, 1
        %p938 = scmp.lt.s32.totalorder %s31, 3
        %s939 = scalar_select %p938, %s31, 3
        %p940 = scmp.lt.s32.totalorder %s935, 0
        %s941 = scalar_select %p940, %s935, 0
        %s942 = sadd.s32 %s941, %s939
        %s943 = smul.addr %s937, 4
        %s944 = sadd.s32 %s942, %s943
        %s945 = smul.addr %s944, 4
        %s946 = scalar_lea.vmem %s9, %s945
      $region72: #{attention_forward.4} parent=67 // pred_fallthru
        _
    $region68: #{attention_forward.4} parent=5 // pred_fallthru
      _
  $region6: #{attention_forward.4} parent=0 // loop_footer
    %s21 = sadd.s32 1, %s17
  $region7: #{attention_forward.4} parent=0 // loop_footer_branch
    %16 = sbr.rel target = $region3
  $region8: #{attention_forward.4} parent=0 // loop_exit
    _

</llo_original>
